<compile_context>
chip_gen: v5e
topology: v5e:2x2
jax: 0.10.0
libtpu: 0.0.40
codegen_flags: <defaults>
</compile_context>

<pallas_src>
import functools

import jax
import jax.numpy as jnp
from jax import lax
from jax.experimental import pallas as pl
from jax.experimental.pallas import tpu as pltpu


_BF16 = jnp.bfloat16
# Scoped-VMEM budget.  48 MiB leaves headroom on v7x (64 MiB physical per TC)
# while still well above the 32 MiB default on v5e/v6e for larger weight tiles.
_VMEM_LIMIT = 48 * 1024 * 1024


def _pick_tile(n, target):
    """Use `target` as the tile if it evenly divides n, otherwise the full extent."""
    return target if (n > target and n % target == 0) else n


# ----------------------------- in-kernel helpers -----------------------------

def _layernorm(x, scale, shift, eps=1e-5):
    # matches torch: mean / biased var over last dim, then affine (rsqrt -> EUP)
    mean = jnp.mean(x, axis=-1, keepdims=True)
    var = jnp.mean((x - mean) ** 2, axis=-1, keepdims=True)
    return (x - mean) * lax.rsqrt(var + eps) * scale + shift


def _gelu_tanh(x):
    c = jnp.sqrt(jnp.float32(2.0 / jnp.pi))
    return 0.5 * x * (1.0 + jnp.tanh(c * (x + 0.044715 * x ** 3)))


# ----------------------------- Pallas kernels --------------------------------

def qkv_proj_kernel(x_ref, ln1s_ref, ln1b_ref, wqkv_ref,
                    q_ref, k_ref, v_ref, *, d, q_scale):
    """LayerNorm1 + fused QKV projection for one (batch, seq-tile) block."""
    x1 = _layernorm(x_ref[0], ln1s_ref[0], ln1b_ref[0])                 # f32 (ts, d)
    qkv = jnp.dot(x1.astype(_BF16), wqkv_ref[...],
                  preferred_element_type=jnp.float32)                    # (ts, 3d) f32 acc
    # fold the 1/sqrt(d_h) attention scale into Q once, here, instead of
    # rescaling every (H, tq, tk) score tile in the attention kernel
    q_ref[0] = (qkv[:, :d] * q_scale).astype(q_ref.dtype)
    k_ref[0] = qkv[:, d:2 * d].astype(k_ref.dtype)
    v_ref[0] = qkv[:, 2 * d:].astype(v_ref.dtype)


def attn_ffn_kernel(x_ref, q_ref, k_ref, v_ref,
                    wo_ref, bo_ref, ln2s_ref, ln2b_ref,
                    w1_ref, b1_ref, w2_ref, b2_ref,
                    out_ref, m_sc, l_sc, acc_sc,
                    *, num_heads, head_dim, tq, tk):
    """Flash-style causal attention over KV tiles + out-proj + LN2 + FFN + residuals."""
    qi = pl.program_id(1)
    ki = pl.program_id(2)
    n_kv = pl.num_programs(2)

    @pl.when(ki == 0)
    def _():
        m_sc[...] = jnp.full(m_sc.shape, -jnp.inf, dtype=m_sc.dtype)
        l_sc[...] = jnp.zeros(l_sc.shape, dtype=l_sc.dtype)
        acc_sc[...] = jnp.zeros(acc_sc.shape, dtype=acc_sc.dtype)

    # Skip KV tiles that lie entirely above the causal diagonal for this Q tile.
    q_last = (qi + 1) * tq - 1
    kv_start = ki * tk

    @pl.when(kv_start <= q_last)
    def _():
        q = q_ref[0]                                                    # (H, tq, dh) bf16 (pre-scaled)
        k = k_ref[0]                                                    # (H, tk, dh) bf16
        v = v_ref[0]                                                    # (H, tk, dh) bf16

        s = jnp.einsum("hqd,hkd->hqk", q, k,
                       preferred_element_type=jnp.float32)              # (H, tq, tk)
        rows = qi * tq + lax.broadcasted_iota(jnp.int32, (tq, tk), 0)
        cols = kv_start + lax.broadcasted_iota(jnp.int32, (tq, tk), 1)
        s = jnp.where((cols <= rows)[None, :, :], s, -jnp.inf)          # causal mask

        m_prev = m_sc[...]
        m_new = jnp.maximum(m_prev, s.max(axis=-1, keepdims=True))
        alpha = jnp.exp(m_prev - m_new)
        p = jnp.exp(s - m_new)
        l_sc[...] = alpha * l_sc[...] + p.sum(axis=-1, keepdims=True)
        acc_sc[...] = alpha * acc_sc[...] + jnp.einsum(
            "hqk,hkd->hqd", p.astype(v.dtype), v,
            preferred_element_type=jnp.float32)
        m_sc[...] = m_new

    @pl.when(ki == n_kv - 1)
    def _():
        # finalize attention: normalize (approx reciprocal -> EUP), per-head out-proj
        zf = acc_sc[...] * pl.reciprocal(l_sc[...], approx=True)        # (H, tq, dh) f32
        zo = jnp.einsum("hqd,hdf->hqf", zf.astype(_BF16), wo_ref[...],
                        preferred_element_type=jnp.float32)             # (H, tq, d)
        z = zo.sum(axis=0) + bo_ref[0]                                  # (tq, d)

        y = z + x_ref[0]                                                # residual 1 (f32)

        # LN2 + feed-forward (GELU) + residual 2
        y1 = _layernorm(y, ln2s_ref[0], ln2b_ref[0])
        h = jnp.dot(y1.astype(_BF16), w1_ref[...],
                    preferred_element_type=jnp.float32) + b1_ref[0]
        h = _gelu_tanh(h)
        ff = jnp.dot(h.astype(_BF16), w2_ref[...],
                     preferred_element_type=jnp.float32) + b2_ref[0]
        out_ref[0] = (ff + y).astype(out_ref.dtype)


def lm_head_kernel(x_ref, lns_ref, lnb_ref, w_ref, o_ref):
    x = _layernorm(x_ref[0], lns_ref[0], lnb_ref[0])                    # (tt, d)
    o_ref[0] = jnp.dot(x.astype(_BF16), w_ref[...],
                       preferred_element_type=jnp.float32)              # (tt, tv)


# ----------------------------- wrappers ---------------------------------------

def _const_spec(shape):
    nd = len(shape)
    return pl.BlockSpec(shape, lambda *_: (0,) * nd)


def _qkv_proj(x, ln1s, ln1b, wqkv, *, seq_tile, num_heads):
    b, T, d = x.shape
    dh = d // num_heads
    kern = functools.partial(qkv_proj_kernel, d=d, q_scale=1.0 / (dh ** 0.5))
    tile_spec = pl.BlockSpec((1, seq_tile, d), lambda bi, ti: (bi, ti, 0))
    return pl.pallas_call(
        kern,
        out_shape=tuple(jax.ShapeDtypeStruct((b, T, d), _BF16) for _ in range(3)),
        grid=(b, T // seq_tile),
        in_specs=[
            tile_spec,                       # x
            _const_spec((1, d)),             # ln1 scale
            _const_spec((1, d)),             # ln1 shift
            _const_spec((d, 3 * d)),         # fused Wqkv (bf16)
        ],
        out_specs=(tile_spec, tile_spec, tile_spec),
        compiler_params=pltpu.CompilerParams(
            dimension_semantics=("parallel", "parallel"),
            vmem_limit_bytes=_VMEM_LIMIT),
    )(x, ln1s, ln1b, wqkv)


def _attn_ffn(x, qh, kh, vh, lp, *, num_heads, tq, tk):
    b, T, d = x.shape
    dh = d // num_heads
    kern = functools.partial(attn_ffn_kernel, num_heads=num_heads,
                             head_dim=dh, tq=tq, tk=tk)
    return pl.pallas_call(
        kern,
        out_shape=jax.ShapeDtypeStruct((b, T, d), jnp.float32),
        grid=(b, T // tq, T // tk),
        in_specs=[
            pl.BlockSpec((1, tq, d), lambda bi, qi, ki: (bi, qi, 0)),          # x (residual)
            pl.BlockSpec((1, num_heads, tq, dh), lambda bi, qi, ki: (bi, 0, qi, 0)),  # Q tile
            pl.BlockSpec((1, num_heads, tk, dh), lambda bi, qi, ki: (bi, 0, ki, 0)),  # K tile
            pl.BlockSpec((1, num_heads, tk, dh), lambda bi, qi, ki: (bi, 0, ki, 0)),  # V tile
            _const_spec((num_heads, dh, d)),   # wo (head-major, bf16)
            _const_spec((1, d)),               # bo
            _const_spec((1, d)),               # ln2 scale
            _const_spec((1, d)),               # ln2 shift
            _const_spec((d, 4 * d)),           # w1 (bf16)
            _const_spec((1, 4 * d)),           # b1
            _const_spec((4 * d, d)),           # w2 (bf16)
            _const_spec((1, d)),               # b2
        ],
        out_specs=pl.BlockSpec((1, tq, d), lambda bi, qi, ki: (bi, qi, 0)),
        scratch_shapes=[
            pltpu.VMEM((num_heads, tq, 1), jnp.float32),    # running row max
            pltpu.VMEM((num_heads, tq, 1), jnp.float32),    # running softmax denom
            pltpu.VMEM((num_heads, tq, dh), jnp.float32),   # weighted-V accumulator
        ],
        compiler_params=pltpu.CompilerParams(
            dimension_semantics=("parallel", "parallel", "arbitrary"),
            vmem_limit_bytes=_VMEM_LIMIT),
    )(x, qh, kh, vh, lp["wo"], lp["bo"], lp["ln2_scale"], lp["ln2_shift"],
      lp["w1"], lp["b1"], lp["w2"], lp["b2"])


def _split_heads(t, num_heads):
    b, T, d = t.shape
    dh = d // num_heads
    # layout plumbing done as XLA glue so the kernels stay transpose-free
    return t.reshape(b, T, num_heads, dh).transpose(0, 2, 1, 3)


def transformer_block(x, lp, *, num_heads, seq_tile_target=128):
    b, T, d = x.shape
    ts = _pick_tile(T, seq_tile_target)
    q, k, v = _qkv_proj(x, lp["ln1_scale"], lp["ln1_shift"], lp["wqkv"],
                        seq_tile=ts, num_heads=num_heads)
    qh = _split_heads(q, num_heads)
    kh = _split_heads(k, num_heads)
    vh = _split_heads(v, num_heads)
    return _attn_ffn(x, qh, kh, vh, lp, num_heads=num_heads, tq=ts, tk=ts)


def lm_head(x, lnf_scale, lnf_shift, w_out, *, seq_tile_target=128, vocab_tile_target=512):
    b, T, d = x.shape
    V = w_out.shape[1]
    tt = _pick_tile(T, seq_tile_target)
    tv = _pick_tile(V, vocab_tile_target)
    return pl.pallas_call(
        lm_head_kernel,
        out_shape=jax.ShapeDtypeStruct((b, T, V), jnp.float32),
        grid=(b, T // tt, V // tv),
        in_specs=[
            pl.BlockSpec((1, tt, d), lambda bi, ti, vi: (bi, ti, 0)),
            pl.BlockSpec((1, d), lambda bi, ti, vi: (0, 0)),
            pl.BlockSpec((1, d), lambda bi, ti, vi: (0, 0)),
            pl.BlockSpec((d, tv), lambda bi, ti, vi: (0, vi)),
        ],
        out_specs=pl.BlockSpec((1, tt, tv), lambda bi, ti, vi: (bi, ti, vi)),
        compiler_params=pltpu.CompilerParams(
            dimension_semantics=("parallel", "parallel", "parallel"),
            vmem_limit_bytes=_VMEM_LIMIT),
    )(x, lnf_scale, lnf_shift, w_out)


def gpt_forward(tokens, params, *, num_heads):
    b, T = tokens.shape
    x = params["tok_emb"][tokens] + params["pos_emb"][None, :T, :]   # embeddings (glue)
    # TODO(synk): drop_emb_layer / attention / FFN dropouts are identity (eval mode).
    for lp in params["layers"]:
        x = transformer_block(x, lp, num_heads=num_heads)
    return lm_head(x, params["lnf_scale"], params["lnf_shift"], params["w_out"])


# ----------------------------- pure-JAX reference -----------------------------

def _gpt_reference(tokens, params, *, num_heads):
    b, T = tokens.shape
    x = params["tok_emb"][tokens] + params["pos_emb"][None, :T, :]
    d = x.shape[-1]
    dh = d // num_heads
    scale = 1.0 / (dh ** 0.5)
    mask = jnp.tril(jnp.ones((T, T), dtype=bool))
    for lp in params["layers"]:
        x1 = _layernorm(x, lp["ln1_scale"][0], lp["ln1_shift"][0])
        qkv = jnp.dot(x1.astype(_BF16), lp["wqkv"], preferred_element_type=jnp.float32)
        q, k, v = [t.astype(_BF16) for t in jnp.split(qkv, 3, axis=-1)]
        qh = q.reshape(b, T, num_heads, dh).transpose(0, 2, 1, 3)
        kh = k.reshape(b, T, num_heads, dh).transpose(0, 2, 1, 3)
        vh = v.reshape(b, T, num_heads, dh).transpose(0, 2, 1, 3)
        s = jnp.einsum("bhqd,bhkd->bhqk", qh, kh,
                       preferred_element_type=jnp.float32) * scale
        s = jnp.where(mask[None, None], s, -jnp.inf)
        a = jax.nn.softmax(s, axis=-1)
        z = jnp.einsum("bhqk,bhkd->bhqd", a.astype(_BF16), vh,
                       preferred_element_type=jnp.float32)
        z = z.transpose(0, 2, 1, 3).reshape(b, T, d)
        wo2 = lp["wo"].reshape(d, d)
        z = jnp.dot(z.astype(_BF16), wo2, preferred_element_type=jnp.float32) + lp["bo"][0]
        y = z + x
        y1 = _layernorm(y, lp["ln2_scale"][0], lp["ln2_shift"][0])
        h = _gelu_tanh(jnp.dot(y1.astype(_BF16), lp["w1"],
                               preferred_element_type=jnp.float32) + lp["b1"][0])
        x = jnp.dot(h.astype(_BF16), lp["w2"],
                    preferred_element_type=jnp.float32) + lp["b2"][0] + y
    xn = _layernorm(x, params["lnf_scale"][0], params["lnf_shift"][0])
    return jnp.dot(xn.astype(_BF16), params["w_out"], preferred_element_type=jnp.float32)


# ----------------------------- parameter init ---------------------------------

def init_params(key, *, V, Tmax, d, n_heads, n_layers):
    dh = d // n_heads
    keys = jax.random.split(key, 3 + n_layers)
    f32 = jnp.float32

    def nrm(k, shape, dtype=_BF16):
        return (0.02 * jax.random.normal(k, shape, f32)).astype(dtype)

    params = {
        "tok_emb": nrm(keys[0], (V, d), f32),
        "pos_emb": nrm(keys[1], (Tmax, d), f32),
        "w_out": nrm(keys[2], (d, V)),                      # bf16
        "lnf_scale": jnp.ones((1, d), f32),
        "lnf_shift": jnp.zeros((1, d), f32),
        "layers": [],
    }
    for l in range(n_layers):
        lk = jax.random.split(keys[3 + l], 4)
        params["layers"].append({
            "ln1_scale": jnp.ones((1, d), f32),
            "ln1_shift": jnp.zeros((1, d), f32),
            "wqkv": nrm(lk[0], (d, 3 * d)),                 # fused QKV, bf16
            "wo": nrm(lk[1], (n_heads, dh, d)),             # head-major out-proj, bf16
            "bo": jnp.zeros((1, d), f32),
            "ln2_scale": jnp.ones((1, d), f32),
            "ln2_shift": jnp.zeros((1, d), f32),
            "w1": nrm(lk[2], (d, 4 * d)),                   # bf16
            "b1": jnp.zeros((1, 4 * d), f32),
            "w2": nrm(lk[3], (4 * d, d)),                   # bf16
            "b2": jnp.zeros((1, d), f32),
        })
    return params


# ----------------------------- main -------------------------------------------

if __name__ == "__main__":
    config = dict(vocab_size=64, max_context_length=16, emb_dim=32,
                  n_heads=4, n_layers=2, drop_rate=0.0, qkv_bias=False)
    batch, T = 2, 8

    key = jax.random.PRNGKey(0)
    pkey, tkey = jax.random.split(key)
    params = init_params(pkey, V=config["vocab_size"], Tmax=config["max_context_length"],
                         d=config["emb_dim"], n_heads=config["n_heads"],
                         n_layers=config["n_layers"])
    tokens = jax.random.randint(tkey, (batch, T), 0, config["vocab_size"], dtype=jnp.int32)

    fwd = jax.jit(functools.partial(gpt_forward, num_heads=config["n_heads"]))
    logits = jax.block_until_ready(fwd(tokens, params))

    assert logits.shape == (batch, T, config["vocab_size"])
    assert bool(jnp.all(jnp.isfinite(logits)))

    ref = _gpt_reference(tokens, params, num_heads=config["n_heads"])
    max_diff = float(jnp.max(jnp.abs(logits - ref)))
    assert bool(jnp.allclose(logits, ref, atol=2e-2, rtol=2e-2)), f"max abs diff {max_diff}"

    print("KERNEL_OK")
</pallas_src>

<mosaic_0001>
module attributes {stable_mosaic.version = 11 : i64} {
  func.func @lm_head_kernel(%arg0: i32, %arg1: i32, %arg2: i32, %arg3: memref<1x8x32xf32, #tpu.memory_space<vmem>>, %arg4: memref<1x32xf32, #tpu.memory_space<vmem>>, %arg5: memref<1x32xf32, #tpu.memory_space<vmem>>, %arg6: memref<32x64xbf16, #tpu.memory_space<vmem>>, %arg7: memref<1x8x64xf32, #tpu.memory_space<vmem>>) attributes {dimension_semantics = [#tpu.dimension_semantics<parallel>, #tpu.dimension_semantics<parallel>, #tpu.dimension_semantics<parallel>], iteration_bounds = array<i64: 2, 1, 1>, scalar_prefetch = 0 : i64, scratch_operands = 0 : i64, tpu.core_type = #tpu.core_type<tc>, window_params = [{transform_indices = @transform_0, window_bounds = array<i64: 1, 8, 32>}, {pipeline_mode = #tpu.pipeline_mode<synchronous>, transform_indices = @transform_1, window_bounds = array<i64: 1, 32>}, {pipeline_mode = #tpu.pipeline_mode<synchronous>, transform_indices = @transform_2, window_bounds = array<i64: 1, 32>}, {transform_indices = @transform_3, window_bounds = array<i64: 32, 64>}, {transform_indices = @transform_4, window_bounds = array<i64: 1, 8, 64>}]} {
    %c0 = arith.constant 0 : index
    %c0_0 = arith.constant 0 : index
    %c0_1 = arith.constant 0 : index
    %0 = vector.load %arg3[%c0, %c0_0, %c0_1] : memref<1x8x32xf32, #tpu.memory_space<vmem>>, vector<1x8x32xf32>
    %1 = vector.shape_cast %0 : vector<1x8x32xf32> to vector<8x32xf32>
    %c0_2 = arith.constant 0 : index
    %c0_3 = arith.constant 0 : index
    %2 = vector.load %arg4[%c0_2, %c0_3] : memref<1x32xf32, #tpu.memory_space<vmem>>, vector<1x32xf32>
    %3 = vector.shape_cast %2 : vector<1x32xf32> to vector<32xf32>
    %c0_4 = arith.constant 0 : index
    %c0_5 = arith.constant 0 : index
    %4 = vector.load %arg5[%c0_4, %c0_5] : memref<1x32xf32, #tpu.memory_space<vmem>>, vector<1x32xf32>
    %5 = vector.shape_cast %4 : vector<1x32xf32> to vector<32xf32>
    %cst = arith.constant dense<0.000000e+00> : vector<8xf32>
    %6 = vector.multi_reduction <add>, %1, %cst [1] : vector<8x32xf32> to vector<8xf32>
    %7 = vector.shape_cast %6 : vector<8xf32> to vector<8x1xf32>
    %cst_6 = arith.constant 3.200000e+01 : f32
    %8 = vector.broadcast %cst_6 : f32 to vector<8x1xf32>
    %9 = arith.divf %7, %8 : vector<8x1xf32>
    %10 = vector.broadcast %9 : vector<8x1xf32> to vector<8x32xf32>
    %11 = arith.subf %1, %10 : vector<8x32xf32>
    %12 = arith.mulf %11, %11 : vector<8x32xf32>
    %cst_7 = arith.constant dense<0.000000e+00> : vector<8xf32>
    %13 = vector.multi_reduction <add>, %12, %cst_7 [1] : vector<8x32xf32> to vector<8xf32>
    %14 = vector.shape_cast %13 : vector<8xf32> to vector<8x1xf32>
    %cst_8 = arith.constant 3.200000e+01 : f32
    %15 = vector.broadcast %cst_8 : f32 to vector<8x1xf32>
    %16 = arith.divf %14, %15 : vector<8x1xf32>
    %17 = vector.broadcast %9 : vector<8x1xf32> to vector<8x32xf32>
    %18 = arith.subf %1, %17 : vector<8x32xf32>
    %cst_9 = arith.constant 9.99999974E-6 : f32
    %19 = vector.broadcast %cst_9 : f32 to vector<8x1xf32>
    %20 = arith.addf %16, %19 : vector<8x1xf32>
    %21 = math.rsqrt %20 : vector<8x1xf32>
    %22 = vector.broadcast %21 : vector<8x1xf32> to vector<8x32xf32>
    %23 = arith.mulf %18, %22 : vector<8x32xf32>
    %24 = vector.shape_cast %3 : vector<32xf32> to vector<1x32xf32>
    %25 = vector.broadcast %24 : vector<1x32xf32> to vector<8x32xf32>
    %26 = arith.mulf %23, %25 : vector<8x32xf32>
    %27 = vector.shape_cast %5 : vector<32xf32> to vector<1x32xf32>
    %28 = vector.broadcast %27 : vector<1x32xf32> to vector<8x32xf32>
    %29 = arith.addf %26, %28 : vector<8x32xf32>
    %30 = arith.truncf %29 : vector<8x32xf32> to vector<8x32xbf16>
    %c0_10 = arith.constant 0 : index
    %c0_11 = arith.constant 0 : index
    %31 = vector.load %arg6[%c0_10, %c0_11] : memref<32x64xbf16, #tpu.memory_space<vmem>>, vector<32x64xbf16>
    %cst_12 = arith.constant dense<0.000000e+00> : vector<8x64xf32>
    %32 = tpu.matmul %30, %31, %cst_12 {dimension_numbers = #tpu.dot_dimension_numbers<[1], [0], [0], [1], [0, 0, 1, 1], [], []>} : vector<8x32xbf16>, vector<32x64xbf16>, vector<8x64xf32> -> vector<8x64xf32>
    %c0_13 = arith.constant 0 : index
    %c0_14 = arith.constant 0 : index
    %c0_15 = arith.constant 0 : index
    %33 = vector.load %arg7[%c0_13, %c0_14, %c0_15] : memref<1x8x64xf32, #tpu.memory_space<vmem>>, vector<1x8x64xf32>
    %34 = vector.shape_cast %33 : vector<1x8x64xf32> to vector<8x64xf32>
    %35 = vector.shape_cast %32 : vector<8x64xf32> to vector<1x8x64xf32>
    tpu.vector_store %arg7[%c0_13, %c0_14, %c0_15], %35 {strides = array<i32>} : memref<1x8x64xf32, #tpu.memory_space<vmem>>, vector<1x8x64xf32>,
    return
  }
  func.func @transform_0(%arg0: i32, %arg1: i32, %arg2: i32) -> (i32, i32, i32) {
    %c0_i32 = arith.constant 0 : i32
    %c0_i32_0 = arith.constant 0 : i32
    return %arg0, %arg1, %c0_i32 : i32, i32, i32
  }
  func.func @transform_1(%arg0: i32, %arg1: i32, %arg2: i32) -> (i32, i32) {
    %c0_i32 = arith.constant 0 : i32
    %c0_i32_0 = arith.constant 0 : i32
    %c0_i32_1 = arith.constant 0 : i32
    return %c0_i32, %c0_i32_0 : i32, i32
  }
  func.func @transform_2(%arg0: i32, %arg1: i32, %arg2: i32) -> (i32, i32) {
    %c0_i32 = arith.constant 0 : i32
    %c0_i32_0 = arith.constant 0 : i32
    %c0_i32_1 = arith.constant 0 : i32
    return %c0_i32, %c0_i32_0 : i32, i32
  }
  func.func @transform_3(%arg0: i32, %arg1: i32, %arg2: i32) -> (i32, i32) {
    %c0_i32 = arith.constant 0 : i32
    %c0_i32_0 = arith.constant 0 : i32
    return %c0_i32, %arg2 : i32, i32
  }
  func.func @transform_4(%arg0: i32, %arg1: i32, %arg2: i32) -> (i32, i32, i32) {
    %c0_i32 = arith.constant 0 : i32
    return %arg0, %arg1, %arg2 : i32, i32, i32
  }
}

module attributes {stable_mosaic.version = 11 : i64} {
  func.func @qkv_proj_kernel(%arg0: i32, %arg1: i32, %arg2: memref<1x8x32xf32, #tpu.memory_space<vmem>>, %arg3: memref<1x32xf32, #tpu.memory_space<vmem>>, %arg4: memref<1x32xf32, #tpu.memory_space<vmem>>, %arg5: memref<32x96xbf16, #tpu.memory_space<vmem>>, %arg6: memref<1x8x32xbf16, #tpu.memory_space<vmem>>, %arg7: memref<1x8x32xbf16, #tpu.memory_space<vmem>>, %arg8: memref<1x8x32xbf16, #tpu.memory_space<vmem>>) attributes {dimension_semantics = [#tpu.dimension_semantics<parallel>, #tpu.dimension_semantics<parallel>], iteration_bounds = array<i64: 2, 1>, scalar_prefetch = 0 : i64, scratch_operands = 0 : i64, tpu.core_type = #tpu.core_type<tc>, window_params = [{transform_indices = @transform_0, window_bounds = array<i64: 1, 8, 32>}, {pipeline_mode = #tpu.pipeline_mode<synchronous>, transform_indices = @transform_1, window_bounds = array<i64: 1, 32>}, {pipeline_mode = #tpu.pipeline_mode<synchronous>, transform_indices = @transform_2, window_bounds = array<i64: 1, 32>}, {pipeline_mode = #tpu.pipeline_mode<synchronous>, transform_indices = @transform_3, window_bounds = array<i64: 32, 96>}, {transform_indices = @transform_4, window_bounds = array<i64: 1, 8, 32>}, {transform_indices = @transform_5, window_bounds = array<i64: 1, 8, 32>}, {transform_indices = @transform_6, window_bounds = array<i64: 1, 8, 32>}]} {
    %c0 = arith.constant 0 : index
    %c0_0 = arith.constant 0 : index
    %c0_1 = arith.constant 0 : index
    %0 = vector.load %arg2[%c0, %c0_0, %c0_1] : memref<1x8x32xf32, #tpu.memory_space<vmem>>, vector<1x8x32xf32>
    %1 = vector.shape_cast %0 : vector<1x8x32xf32> to vector<8x32xf32>
    %c0_2 = arith.constant 0 : index
    %c0_3 = arith.constant 0 : index
    %2 = vector.load %arg3[%c0_2, %c0_3] : memref<1x32xf32, #tpu.memory_space<vmem>>, vector<1x32xf32>
    %3 = vector.shape_cast %2 : vector<1x32xf32> to vector<32xf32>
    %c0_4 = arith.constant 0 : index
    %c0_5 = arith.constant 0 : index
    %4 = vector.load %arg4[%c0_4, %c0_5] : memref<1x32xf32, #tpu.memory_space<vmem>>, vector<1x32xf32>
    %5 = vector.shape_cast %4 : vector<1x32xf32> to vector<32xf32>
    %cst = arith.constant dense<0.000000e+00> : vector<8xf32>
    %6 = vector.multi_reduction <add>, %1, %cst [1] : vector<8x32xf32> to vector<8xf32>
    %7 = vector.shape_cast %6 : vector<8xf32> to vector<8x1xf32>
    %cst_6 = arith.constant 3.200000e+01 : f32
    %8 = vector.broadcast %cst_6 : f32 to vector<8x1xf32>
    %9 = arith.divf %7, %8 : vector<8x1xf32>
    %10 = vector.broadcast %9 : vector<8x1xf32> to vector<8x32xf32>
    %11 = arith.subf %1, %10 : vector<8x32xf32>
    %12 = arith.mulf %11, %11 : vector<8x32xf32>
    %cst_7 = arith.constant dense<0.000000e+00> : vector<8xf32>
    %13 = vector.multi_reduction <add>, %12, %cst_7 [1] : vector<8x32xf32> to vector<8xf32>
    %14 = vector.shape_cast %13 : vector<8xf32> to vector<8x1xf32>
    %cst_8 = arith.constant 3.200000e+01 : f32
    %15 = vector.broadcast %cst_8 : f32 to vector<8x1xf32>
    %16 = arith.divf %14, %15 : vector<8x1xf32>
    %17 = vector.broadcast %9 : vector<8x1xf32> to vector<8x32xf32>
    %18 = arith.subf %1, %17 : vector<8x32xf32>
    %cst_9 = arith.constant 9.99999974E-6 : f32
    %19 = vector.broadcast %cst_9 : f32 to vector<8x1xf32>
    %20 = arith.addf %16, %19 : vector<8x1xf32>
    %21 = math.rsqrt %20 : vector<8x1xf32>
    %22 = vector.broadcast %21 : vector<8x1xf32> to vector<8x32xf32>
    %23 = arith.mulf %18, %22 : vector<8x32xf32>
    %24 = vector.shape_cast %3 : vector<32xf32> to vector<1x32xf32>
    %25 = vector.broadcast %24 : vector<1x32xf32> to vector<8x32xf32>
    %26 = arith.mulf %23, %25 : vector<8x32xf32>
    %27 = vector.shape_cast %5 : vector<32xf32> to vector<1x32xf32>
    %28 = vector.broadcast %27 : vector<1x32xf32> to vector<8x32xf32>
    %29 = arith.addf %26, %28 : vector<8x32xf32>
    %30 = arith.truncf %29 : vector<8x32xf32> to vector<8x32xbf16>
    %c0_10 = arith.constant 0 : index
    %c0_11 = arith.constant 0 : index
    %31 = vector.load %arg5[%c0_10, %c0_11] : memref<32x96xbf16, #tpu.memory_space<vmem>>, vector<32x96xbf16>
    %cst_12 = arith.constant dense<0.000000e+00> : vector<8x96xf32>
    %32 = tpu.matmul %30, %31, %cst_12 {dimension_numbers = #tpu.dot_dimension_numbers<[1], [0], [0], [1], [0, 0, 1, 1], [], []>} : vector<8x32xbf16>, vector<32x96xbf16>, vector<8x96xf32> -> vector<8x96xf32>
    %33 = vector.extract_strided_slice %32 {offsets = [0, 0], sizes = [8, 32], strides = [1, 1]} : vector<8x96xf32> to vector<8x32xf32>
    %cst_13 = arith.constant 0.353553385 : f32
    %34 = vector.broadcast %cst_13 : f32 to vector<8x32xf32>
    %35 = arith.mulf %33, %34 : vector<8x32xf32>
    %36 = arith.truncf %35 : vector<8x32xf32> to vector<8x32xbf16>
    %c0_14 = arith.constant 0 : index
    %c0_15 = arith.constant 0 : index
    %c0_16 = arith.constant 0 : index
    %37 = vector.load %arg6[%c0_14, %c0_15, %c0_16] : memref<1x8x32xbf16, #tpu.memory_space<vmem>>, vector<1x8x32xbf16>
    %38 = vector.shape_cast %37 : vector<1x8x32xbf16> to vector<8x32xbf16>
    %39 = vector.shape_cast %36 : vector<8x32xbf16> to vector<1x8x32xbf16>
    tpu.vector_store %arg6[%c0_14, %c0_15, %c0_16], %39 {strides = array<i32>} : memref<1x8x32xbf16, #tpu.memory_space<vmem>>, vector<1x8x32xbf16>,
    %40 = vector.extract_strided_slice %32 {offsets = [0, 32], sizes = [8, 32], strides = [1, 1]} : vector<8x96xf32> to vector<8x32xf32>
    %41 = arith.truncf %40 : vector<8x32xf32> to vector<8x32xbf16>
    %c0_17 = arith.constant 0 : index
    %c0_18 = arith.constant 0 : index
    %c0_19 = arith.constant 0 : index
    %42 = vector.load %arg7[%c0_17, %c0_18, %c0_19] : memref<1x8x32xbf16, #tpu.memory_space<vmem>>, vector<1x8x32xbf16>
    %43 = vector.shape_cast %42 : vector<1x8x32xbf16> to vector<8x32xbf16>
    %44 = vector.shape_cast %41 : vector<8x32xbf16> to vector<1x8x32xbf16>
    tpu.vector_store %arg7[%c0_17, %c0_18, %c0_19], %44 {strides = array<i32>} : memref<1x8x32xbf16, #tpu.memory_space<vmem>>, vector<1x8x32xbf16>,
    %45 = vector.extract_strided_slice %32 {offsets = [0, 64], sizes = [8, 32], strides = [1, 1]} : vector<8x96xf32> to vector<8x32xf32>
    %46 = arith.truncf %45 : vector<8x32xf32> to vector<8x32xbf16>
    %c0_20 = arith.constant 0 : index
    %c0_21 = arith.constant 0 : index
    %c0_22 = arith.constant 0 : index
    %47 = vector.load %arg8[%c0_20, %c0_21, %c0_22] : memref<1x8x32xbf16, #tpu.memory_space<vmem>>, vector<1x8x32xbf16>
    %48 = vector.shape_cast %47 : vector<1x8x32xbf16> to vector<8x32xbf16>
    %49 = vector.shape_cast %46 : vector<8x32xbf16> to vector<1x8x32xbf16>
    tpu.vector_store %arg8[%c0_20, %c0_21, %c0_22], %49 {strides = array<i32>} : memref<1x8x32xbf16, #tpu.memory_space<vmem>>, vector<1x8x32xbf16>,
    return
  }
  func.func @transform_0(%arg0: i32, %arg1: i32) -> (i32, i32, i32) {
    %c0_i32 = arith.constant 0 : i32
    %c0_i32_0 = arith.constant 0 : i32
    return %arg0, %arg1, %c0_i32 : i32, i32, i32
  }
  func.func @transform_1(%arg0: i32, %arg1: i32) -> (i32, i32) {
    %c0_i32 = arith.constant 0 : i32
    %c0_i32_0 = arith.constant 0 : i32
    %c0_i32_1 = arith.constant 0 : i32
    return %c0_i32, %c0_i32_0 : i32, i32
  }
  func.func @transform_2(%arg0: i32, %arg1: i32) -> (i32, i32) {
    %c0_i32 = arith.constant 0 : i32
    %c0_i32_0 = arith.constant 0 : i32
    %c0_i32_1 = arith.constant 0 : i32
    return %c0_i32, %c0_i32_0 : i32, i32
  }
  func.func @transform_3(%arg0: i32, %arg1: i32) -> (i32, i32) {
    %c0_i32 = arith.constant 0 : i32
    %c0_i32_0 = arith.constant 0 : i32
    %c0_i32_1 = arith.constant 0 : i32
    return %c0_i32, %c0_i32_0 : i32, i32
  }
  func.func @transform_4(%arg0: i32, %arg1: i32) -> (i32, i32, i32) {
    %c0_i32 = arith.constant 0 : i32
    %c0_i32_0 = arith.constant 0 : i32
    return %arg0, %arg1, %c0_i32 : i32, i32, i32
  }
  func.func @transform_5(%arg0: i32, %arg1: i32) -> (i32, i32, i32) {
    %c0_i32 = arith.constant 0 : i32
    %c0_i32_0 = arith.constant 0 : i32
    return %arg0, %arg1, %c0_i32 : i32, i32, i32
  }
  func.func @transform_6(%arg0: i32, %arg1: i32) -> (i32, i32, i32) {
    %c0_i32 = arith.constant 0 : i32
    %c0_i32_0 = arith.constant 0 : i32
    return %arg0, %arg1, %c0_i32 : i32, i32, i32
  }
}

module attributes {stable_mosaic.version = 11 : i64} {
  func.func @attn_ffn_kernel(%arg0: i32, %arg1: i32, %arg2: i32, %arg3: memref<1x8x32xf32, #tpu.memory_space<vmem>>, %arg4: memref<1x4x8x8xbf16, #tpu.memory_space<vmem>>, %arg5: memref<1x4x8x8xbf16, #tpu.memory_space<vmem>>, %arg6: memref<1x4x8x8xbf16, #tpu.memory_space<vmem>>, %arg7: memref<4x8x32xbf16, #tpu.memory_space<vmem>>, %arg8: memref<1x32xf32, #tpu.memory_space<vmem>>, %arg9: memref<1x32xf32, #tpu.memory_space<vmem>>, %arg10: memref<1x32xf32, #tpu.memory_space<vmem>>, %arg11: memref<32x128xbf16, #tpu.memory_space<vmem>>, %arg12: memref<1x128xf32, #tpu.memory_space<vmem>>, %arg13: memref<128x32xbf16, #tpu.memory_space<vmem>>, %arg14: memref<1x32xf32, #tpu.memory_space<vmem>>, %arg15: memref<1x8x32xf32, #tpu.memory_space<vmem>>, %arg16: memref<4x8x1xf32, #tpu.memory_space<vmem>>, %arg17: memref<4x8x1xf32, #tpu.memory_space<vmem>>, %arg18: memref<4x8x8xf32, #tpu.memory_space<vmem>>) attributes {dimension_semantics = [#tpu.dimension_semantics<parallel>, #tpu.dimension_semantics<parallel>, #tpu.dimension_semantics<arbitrary>], iteration_bounds = array<i64: 2, 1, 1>, scalar_prefetch = 0 : i64, scratch_operands = 3 : i64, tpu.core_type = #tpu.core_type<tc>, window_params = [{transform_indices = @transform_0, window_bounds = array<i64: 1, 8, 32>}, {transform_indices = @transform_1, window_bounds = array<i64: 1, 4, 8, 8>}, {transform_indices = @transform_2, window_bounds = array<i64: 1, 4, 8, 8>}, {transform_indices = @transform_3, window_bounds = array<i64: 1, 4, 8, 8>}, {pipeline_mode = #tpu.pipeline_mode<synchronous>, transform_indices = @transform_4, window_bounds = array<i64: 4, 8, 32>}, {pipeline_mode = #tpu.pipeline_mode<synchronous>, transform_indices = @transform_5, window_bounds = array<i64: 1, 32>}, {pipeline_mode = #tpu.pipeline_mode<synchronous>, transform_indices = @transform_6, window_bounds = array<i64: 1, 32>}, {pipeline_mode = #tpu.pipeline_mode<synchronous>, transform_indices = @transform_7, window_bounds = array<i64: 1, 32>}, {pipeline_mode = #tpu.pipeline_mode<synchronous>, transform_indices = @transform_8, window_bounds = array<i64: 32, 128>}, {pipeline_mode = #tpu.pipeline_mode<synchronous>, transform_indices = @transform_9, window_bounds = array<i64: 1, 128>}, {pipeline_mode = #tpu.pipeline_mode<synchronous>, transform_indices = @transform_10, window_bounds = array<i64: 128, 32>}, {pipeline_mode = #tpu.pipeline_mode<synchronous>, transform_indices = @transform_11, window_bounds = array<i64: 1, 32>}, {transform_indices = @transform_12, window_bounds = array<i64: 1, 8, 32>}]} {
    %c0_i32 = arith.constant 0 : i32
    %0 = arith.cmpi eq, %arg2, %c0_i32 : i32
    %1 = arith.extui %0 : i1 to i32
    %c0_i32_0 = arith.constant 0 : i32
    %2 = arith.cmpi ne, %1, %c0_i32_0 : i32
    scf.if %2 {
      %cst = arith.constant 0xFF800000 : f32
      %13 = vector.broadcast %cst : f32 to vector<4x8x1xf32>
      %c0 = arith.constant 0 : index
      %c0_6 = arith.constant 0 : index
      %c0_7 = arith.constant 0 : index
      %14 = vector.load %arg16[%c0, %c0_6, %c0_7] : memref<4x8x1xf32, #tpu.memory_space<vmem>>, vector<4x8x1xf32>
      tpu.vector_store %arg16[%c0, %c0_6, %c0_7], %13 {strides = array<i32>} : memref<4x8x1xf32, #tpu.memory_space<vmem>>, vector<4x8x1xf32>,
      %cst_8 = arith.constant 0.000000e+00 : f32
      %15 = vector.broadcast %cst_8 : f32 to vector<4x8x1xf32>
      %c0_9 = arith.constant 0 : index
      %c0_10 = arith.constant 0 : index
      %c0_11 = arith.constant 0 : index
      %16 = vector.load %arg17[%c0_9, %c0_10, %c0_11] : memref<4x8x1xf32, #tpu.memory_space<vmem>>, vector<4x8x1xf32>
      tpu.vector_store %arg17[%c0_9, %c0_10, %c0_11], %15 {strides = array<i32>} : memref<4x8x1xf32, #tpu.memory_space<vmem>>, vector<4x8x1xf32>,
      %cst_12 = arith.constant 0.000000e+00 : f32
      %17 = vector.broadcast %cst_12 : f32 to vector<4x8x8xf32>
      %c0_13 = arith.constant 0 : index
      %c0_14 = arith.constant 0 : index
      %c0_15 = arith.constant 0 : index
      %18 = vector.load %arg18[%c0_13, %c0_14, %c0_15] : memref<4x8x8xf32, #tpu.memory_space<vmem>>, vector<4x8x8xf32>
      tpu.vector_store %arg18[%c0_13, %c0_14, %c0_15], %17 {strides = array<i32>} : memref<4x8x8xf32, #tpu.memory_space<vmem>>, vector<4x8x8xf32>,
    } else {
    }
    %c1_i32 = arith.constant 1 : i32
    %3 = arith.addi %arg1, %c1_i32 : i32
    %c8_i32 = arith.constant 8 : i32
    %4 = arith.muli %3, %c8_i32 : i32
    %c1_i32_1 = arith.constant 1 : i32
    %5 = arith.subi %4, %c1_i32_1 : i32
    %c8_i32_2 = arith.constant 8 : i32
    %6 = arith.muli %arg2, %c8_i32_2 : i32
    %7 = arith.cmpi sle, %6, %5 : i32
    %8 = arith.extui %7 : i1 to i32
    %c0_i32_3 = arith.constant 0 : i32
    %9 = arith.cmpi ne, %8, %c0_i32_3 : i32
    scf.if %9 {
      %c0 = arith.constant 0 : index
      %c0_6 = arith.constant 0 : index
      %c0_7 = arith.constant 0 : index
      %c0_8 = arith.constant 0 : index
      %13 = vector.load %arg4[%c0, %c0_6, %c0_7, %c0_8] : memref<1x4x8x8xbf16, #tpu.memory_space<vmem>>, vector<1x4x8x8xbf16>
      %14 = vector.shape_cast %13 : vector<1x4x8x8xbf16> to vector<4x8x8xbf16>
      %c0_9 = arith.constant 0 : index
      %c0_10 = arith.constant 0 : index
      %c0_11 = arith.constant 0 : index
      %c0_12 = arith.constant 0 : index
      %15 = vector.load %arg5[%c0_9, %c0_10, %c0_11, %c0_12] : memref<1x4x8x8xbf16, #tpu.memory_space<vmem>>, vector<1x4x8x8xbf16>
      %16 = vector.shape_cast %15 : vector<1x4x8x8xbf16> to vector<4x8x8xbf16>
      %c0_13 = arith.constant 0 : index
      %c0_14 = arith.constant 0 : index
      %c0_15 = arith.constant 0 : index
      %c0_16 = arith.constant 0 : index
      %17 = vector.load %arg6[%c0_13, %c0_14, %c0_15, %c0_16] : memref<1x4x8x8xbf16, #tpu.memory_space<vmem>>, vector<1x4x8x8xbf16>
      %18 = vector.shape_cast %17 : vector<1x4x8x8xbf16> to vector<4x8x8xbf16>
      "tpu.trace_start"() <{level = 10 : i32, message = "hqd,hkd->hqk"}> : () -> ()
      %cst = arith.constant dense<0.000000e+00> : vector<4x8x8xf32>
      %19 = tpu.matmul %14, %16, %cst {dimension_numbers = #tpu.dot_dimension_numbers<[2], [2], [1], [1], [0, 0, 0, 1, 1, 1], [0], [0]>} : vector<4x8x8xbf16>, vector<4x8x8xbf16>, vector<4x8x8xf32> -> vector<4x8x8xf32>
      "tpu.trace_stop"() : () -> ()
      %c8_i32_17 = arith.constant 8 : i32
      %20 = arith.muli %arg1, %c8_i32_17 : i32
      %21 = tpu.iota {dimensions = array<i32: 0>} : vector<8x8xi32>
      %22 = vector.broadcast %20 : i32 to vector<8x8xi32>
      %23 = arith.addi %22, %21 : vector<8x8xi32>
      %24 = tpu.iota {dimensions = array<i32: 1>} : vector<8x8xi32>
      %25 = vector.broadcast %6 : i32 to vector<8x8xi32>
      %26 = arith.addi %25, %24 : vector<8x8xi32>
      %27 = arith.cmpi sle, %26, %23 : vector<8x8xi32>
      %28 = vector.shape_cast %27 : vector<8x8xi1> to vector<1x8x8xi1>
      %cst_18 = arith.constant 0xFF800000 : f32
      %29 = vector.shape_cast %28 : vector<1x8x8xi1> to vector<1x8x8xi1>
      %30 = vector.broadcast %29 : vector<1x8x8xi1> to vector<4x8x8xi1>
      %31 = vector.broadcast %cst_18 : f32 to vector<4x8x8xf32>
      %32 = arith.select %30, %19, %31 : vector<4x8x8xi1>, vector<4x8x8xf32>
      %c0_19 = arith.constant 0 : index
      %c0_20 = arith.constant 0 : index
      %c0_21 = arith.constant 0 : index
      %33 = vector.load %arg16[%c0_19, %c0_20, %c0_21] : memref<4x8x1xf32, #tpu.memory_space<vmem>>, vector<4x8x1xf32>
      %cst_22 = arith.constant dense<0xFF800000> : vector<4x8xf32>
      %34 = vector.multi_reduction <maximumf>, %32, %cst_22 [2] : vector<4x8x8xf32> to vector<4x8xf32>
      %35 = vector.shape_cast %34 : vector<4x8xf32> to vector<4x8x1xf32>
      %36 = arith.maximumf %33, %35 : vector<4x8x1xf32>
      %37 = arith.subf %33, %36 : vector<4x8x1xf32>
      %38 = math.exp %37 : vector<4x8x1xf32>
      %39 = vector.broadcast %36 : vector<4x8x1xf32> to vector<4x8x8xf32>
      %40 = arith.subf %32, %39 : vector<4x8x8xf32>
      %41 = math.exp %40 : vector<4x8x8xf32>
      %c0_23 = arith.constant 0 : index
      %c0_24 = arith.constant 0 : index
      %c0_25 = arith.constant 0 : index
      %42 = vector.load %arg17[%c0_23, %c0_24, %c0_25] : memref<4x8x1xf32, #tpu.memory_space<vmem>>, vector<4x8x1xf32>
      %43 = arith.mulf %38, %42 : vector<4x8x1xf32>
      %cst_26 = arith.constant dense<0.000000e+00> : vector<4x8xf32>
      %44 = vector.multi_reduction <add>, %41, %cst_26 [2] : vector<4x8x8xf32> to vector<4x8xf32>
      %45 = vector.shape_cast %44 : vector<4x8xf32> to vector<4x8x1xf32>
      %46 = arith.addf %43, %45 : vector<4x8x1xf32>
      %c0_27 = arith.constant 0 : index
      %c0_28 = arith.constant 0 : index
      %c0_29 = arith.constant 0 : index
      %47 = vector.load %arg17[%c0_27, %c0_28, %c0_29] : memref<4x8x1xf32, #tpu.memory_space<vmem>>, vector<4x8x1xf32>
      tpu.vector_store %arg17[%c0_27, %c0_28, %c0_29], %46 {strides = array<i32>} : memref<4x8x1xf32, #tpu.memory_space<vmem>>, vector<4x8x1xf32>,
      %c0_30 = arith.constant 0 : index
      %c0_31 = arith.constant 0 : index
      %c0_32 = arith.constant 0 : index
      %48 = vector.load %arg18[%c0_30, %c0_31, %c0_32] : memref<4x8x8xf32, #tpu.memory_space<vmem>>, vector<4x8x8xf32>
      %49 = vector.broadcast %38 : vector<4x8x1xf32> to vector<4x8x8xf32>
      %50 = arith.mulf %49, %48 : vector<4x8x8xf32>
      %51 = arith.truncf %41 : vector<4x8x8xf32> to vector<4x8x8xbf16>
      "tpu.trace_start"() <{level = 10 : i32, message = "hqk,hkd->hqd"}> : () -> ()
      %cst_33 = arith.constant dense<0.000000e+00> : vector<4x8x8xf32>
      %52 = tpu.matmul %51, %18, %cst_33 {dimension_numbers = #tpu.dot_dimension_numbers<[2], [1], [1], [2], [0, 0, 0, 1, 1, 2], [0], [0]>} : vector<4x8x8xbf16>, vector<4x8x8xbf16>, vector<4x8x8xf32> -> vector<4x8x8xf32>
      "tpu.trace_stop"() : () -> ()
      %53 = arith.addf %50, %52 : vector<4x8x8xf32>
      %c0_34 = arith.constant 0 : index
      %c0_35 = arith.constant 0 : index
      %c0_36 = arith.constant 0 : index
      %54 = vector.load %arg18[%c0_34, %c0_35, %c0_36] : memref<4x8x8xf32, #tpu.memory_space<vmem>>, vector<4x8x8xf32>
      tpu.vector_store %arg18[%c0_34, %c0_35, %c0_36], %53 {strides = array<i32>} : memref<4x8x8xf32, #tpu.memory_space<vmem>>, vector<4x8x8xf32>,
      %c0_37 = arith.constant 0 : index
      %c0_38 = arith.constant 0 : index
      %c0_39 = arith.constant 0 : index
      %55 = vector.load %arg16[%c0_37, %c0_38, %c0_39] : memref<4x8x1xf32, #tpu.memory_space<vmem>>, vector<4x8x1xf32>
      tpu.vector_store %arg16[%c0_37, %c0_38, %c0_39], %36 {strides = array<i32>} : memref<4x8x1xf32, #tpu.memory_space<vmem>>, vector<4x8x1xf32>,
    } else {
    }
    %c0_i32_4 = arith.constant 0 : i32
    %10 = arith.cmpi eq, %arg2, %c0_i32_4 : i32
    %11 = arith.extui %10 : i1 to i32
    %c0_i32_5 = arith.constant 0 : i32
    %12 = arith.cmpi ne, %11, %c0_i32_5 : i32
    scf.if %12 {
      %c0 = arith.constant 0 : index
      %c0_6 = arith.constant 0 : index
      %c0_7 = arith.constant 0 : index
      %13 = vector.load %arg18[%c0, %c0_6, %c0_7] : memref<4x8x8xf32, #tpu.memory_space<vmem>>, vector<4x8x8xf32>
      %c0_8 = arith.constant 0 : index
      %c0_9 = arith.constant 0 : index
      %c0_10 = arith.constant 0 : index
      %14 = vector.load %arg17[%c0_8, %c0_9, %c0_10] : memref<4x8x1xf32, #tpu.memory_space<vmem>>, vector<4x8x1xf32>
      %15 = tpu.reciprocal %14 {approx = true} : vector<4x8x1xf32> -> vector<4x8x1xf32>
      %16 = vector.broadcast %15 : vector<4x8x1xf32> to vector<4x8x8xf32>
      %17 = arith.mulf %13, %16 : vector<4x8x8xf32>
      %18 = arith.truncf %17 : vector<4x8x8xf32> to vector<4x8x8xbf16>
      %c0_11 = arith.constant 0 : index
      %c0_12 = arith.constant 0 : index
      %c0_13 = arith.constant 0 : index
      %19 = vector.load %arg7[%c0_11, %c0_12, %c0_13] : memref<4x8x32xbf16, #tpu.memory_space<vmem>>, vector<4x8x32xbf16>
      "tpu.trace_start"() <{level = 10 : i32, message = "hqd,hdf->hqf"}> : () -> ()
      %cst = arith.constant dense<0.000000e+00> : vector<4x8x32xf32>
      %20 = tpu.matmul %18, %19, %cst {dimension_numbers = #tpu.dot_dimension_numbers<[2], [1], [1], [2], [0, 0, 0, 1, 1, 2], [0], [0]>} : vector<4x8x8xbf16>, vector<4x8x32xbf16>, vector<4x8x32xf32> -> vector<4x8x32xf32>
      "tpu.trace_stop"() : () -> ()
      %cst_14 = arith.constant dense<0.000000e+00> : vector<8x32xf32>
      %21 = vector.multi_reduction <add>, %20, %cst_14 [0] : vector<4x8x32xf32> to vector<8x32xf32>
      %c0_15 = arith.constant 0 : index
      %c0_16 = arith.constant 0 : index
      %22 = vector.load %arg8[%c0_15, %c0_16] : memref<1x32xf32, #tpu.memory_space<vmem>>, vector<1x32xf32>
      %23 = vector.shape_cast %22 : vector<1x32xf32> to vector<32xf32>
      %24 = vector.shape_cast %23 : vector<32xf32> to vector<1x32xf32>
      %25 = vector.broadcast %24 : vector<1x32xf32> to vector<8x32xf32>
      %26 = arith.addf %21, %25 : vector<8x32xf32>
      %c0_17 = arith.constant 0 : index
      %c0_18 = arith.constant 0 : index
      %c0_19 = arith.constant 0 : index
      %27 = vector.load %arg3[%c0_17, %c0_18, %c0_19] : memref<1x8x32xf32, #tpu.memory_space<vmem>>, vector<1x8x32xf32>
      %28 = vector.shape_cast %27 : vector<1x8x32xf32> to vector<8x32xf32>
      %29 = arith.addf %26, %28 : vector<8x32xf32>
      %c0_20 = arith.constant 0 : index
      %c0_21 = arith.constant 0 : index
      %30 = vector.load %arg9[%c0_20, %c0_21] : memref<1x32xf32, #tpu.memory_space<vmem>>, vector<1x32xf32>
      %31 = vector.shape_cast %30 : vector<1x32xf32> to vector<32xf32>
      %c0_22 = arith.constant 0 : index
      %c0_23 = arith.constant 0 : index
      %32 = vector.load %arg10[%c0_22, %c0_23] : memref<1x32xf32, #tpu.memory_space<vmem>>, vector<1x32xf32>
      %33 = vector.shape_cast %32 : vector<1x32xf32> to vector<32xf32>
      %cst_24 = arith.constant dense<0.000000e+00> : vector<8xf32>
      %34 = vector.multi_reduction <add>, %29, %cst_24 [1] : vector<8x32xf32> to vector<8xf32>
      %35 = vector.shape_cast %34 : vector<8xf32> to vector<8x1xf32>
      %cst_25 = arith.constant 3.200000e+01 : f32
      %36 = vector.broadcast %cst_25 : f32 to vector<8x1xf32>
      %37 = arith.divf %35, %36 : vector<8x1xf32>
      %38 = vector.broadcast %37 : vector<8x1xf32> to vector<8x32xf32>
      %39 = arith.subf %29, %38 : vector<8x32xf32>
      %40 = arith.mulf %39, %39 : vector<8x32xf32>
      %cst_26 = arith.constant dense<0.000000e+00> : vector<8xf32>
      %41 = vector.multi_reduction <add>, %40, %cst_26 [1] : vector<8x32xf32> to vector<8xf32>
      %42 = vector.shape_cast %41 : vector<8xf32> to vector<8x1xf32>
      %cst_27 = arith.constant 3.200000e+01 : f32
      %43 = vector.broadcast %cst_27 : f32 to vector<8x1xf32>
      %44 = arith.divf %42, %43 : vector<8x1xf32>
      %45 = vector.broadcast %37 : vector<8x1xf32> to vector<8x32xf32>
      %46 = arith.subf %29, %45 : vector<8x32xf32>
      %cst_28 = arith.constant 9.99999974E-6 : f32
      %47 = vector.broadcast %cst_28 : f32 to vector<8x1xf32>
      %48 = arith.addf %44, %47 : vector<8x1xf32>
      %49 = math.rsqrt %48 : vector<8x1xf32>
      %50 = vector.broadcast %49 : vector<8x1xf32> to vector<8x32xf32>
      %51 = arith.mulf %46, %50 : vector<8x32xf32>
      %52 = vector.shape_cast %31 : vector<32xf32> to vector<1x32xf32>
      %53 = vector.broadcast %52 : vector<1x32xf32> to vector<8x32xf32>
      %54 = arith.mulf %51, %53 : vector<8x32xf32>
      %55 = vector.shape_cast %33 : vector<32xf32> to vector<1x32xf32>
      %56 = vector.broadcast %55 : vector<1x32xf32> to vector<8x32xf32>
      %57 = arith.addf %54, %56 : vector<8x32xf32>
      %58 = arith.truncf %57 : vector<8x32xf32> to vector<8x32xbf16>
      %c0_29 = arith.constant 0 : index
      %c0_30 = arith.constant 0 : index
      %59 = vector.load %arg11[%c0_29, %c0_30] : memref<32x128xbf16, #tpu.memory_space<vmem>>, vector<32x128xbf16>
      %cst_31 = arith.constant dense<0.000000e+00> : vector<8x128xf32>
      %60 = tpu.matmul %58, %59, %cst_31 {dimension_numbers = #tpu.dot_dimension_numbers<[1], [0], [0], [1], [0, 0, 1, 1], [], []>} : vector<8x32xbf16>, vector<32x128xbf16>, vector<8x128xf32> -> vector<8x128xf32>
      %c0_32 = arith.constant 0 : index
      %c0_33 = arith.constant 0 : index
      %61 = vector.load %arg12[%c0_32, %c0_33] : memref<1x128xf32, #tpu.memory_space<vmem>>, vector<1x128xf32>
      %62 = vector.shape_cast %61 : vector<1x128xf32> to vector<128xf32>
      %63 = vector.shape_cast %62 : vector<128xf32> to vector<1x128xf32>
      %64 = vector.broadcast %63 : vector<1x128xf32> to vector<8x128xf32>
      %65 = arith.addf %60, %64 : vector<8x128xf32>
      %cst_34 = arith.constant 0.636619746 : f32
      %66 = math.sqrt %cst_34 : f32
      %cst_35 = arith.constant 5.000000e-01 : f32
      %67 = vector.broadcast %cst_35 : f32 to vector<8x128xf32>
      %68 = arith.mulf %67, %65 : vector<8x128xf32>
      %69 = arith.mulf %65, %65 : vector<8x128xf32>
      %70 = arith.mulf %65, %69 : vector<8x128xf32>
      %cst_36 = arith.constant 4.471500e-02 : f32
      %71 = vector.broadcast %cst_36 : f32 to vector<8x128xf32>
      %72 = arith.mulf %71, %70 : vector<8x128xf32>
      %73 = arith.addf %65, %72 : vector<8x128xf32>
      %74 = vector.broadcast %66 : f32 to vector<8x128xf32>
      %75 = arith.mulf %74, %73 : vector<8x128xf32>
      %76 = math.tanh %75 : vector<8x128xf32>
      %cst_37 = arith.constant 1.000000e+00 : f32
      %77 = vector.broadcast %cst_37 : f32 to vector<8x128xf32>
      %78 = arith.addf %77, %76 : vector<8x128xf32>
      %79 = arith.mulf %68, %78 : vector<8x128xf32>
      %80 = arith.truncf %79 : vector<8x128xf32> to vector<8x128xbf16>
      %c0_38 = arith.constant 0 : index
      %c0_39 = arith.constant 0 : index
      %81 = vector.load %arg13[%c0_38, %c0_39] : memref<128x32xbf16, #tpu.memory_space<vmem>>, vector<128x32xbf16>
      %cst_40 = arith.constant dense<0.000000e+00> : vector<8x32xf32>
      %82 = tpu.matmul %80, %81, %cst_40 {dimension_numbers = #tpu.dot_dimension_numbers<[1], [0], [0], [1], [0, 0, 1, 1], [], []>} : vector<8x128xbf16>, vector<128x32xbf16>, vector<8x32xf32> -> vector<8x32xf32>
      %c0_41 = arith.constant 0 : index
      %c0_42 = arith.constant 0 : index
      %83 = vector.load %arg14[%c0_41, %c0_42] : memref<1x32xf32, #tpu.memory_space<vmem>>, vector<1x32xf32>
      %84 = vector.shape_cast %83 : vector<1x32xf32> to vector<32xf32>
      %85 = vector.shape_cast %84 : vector<32xf32> to vector<1x32xf32>
      %86 = vector.broadcast %85 : vector<1x32xf32> to vector<8x32xf32>
      %87 = arith.addf %82, %86 : vector<8x32xf32>
      %88 = arith.addf %87, %29 : vector<8x32xf32>
      %c0_43 = arith.constant 0 : index
      %c0_44 = arith.constant 0 : index
      %c0_45 = arith.constant 0 : index
      %89 = vector.load %arg15[%c0_43, %c0_44, %c0_45] : memref<1x8x32xf32, #tpu.memory_space<vmem>>, vector<1x8x32xf32>
      %90 = vector.shape_cast %89 : vector<1x8x32xf32> to vector<8x32xf32>
      %91 = vector.shape_cast %88 : vector<8x32xf32> to vector<1x8x32xf32>
      tpu.vector_store %arg15[%c0_43, %c0_44, %c0_45], %91 {strides = array<i32>} : memref<1x8x32xf32, #tpu.memory_space<vmem>>, vector<1x8x32xf32>,
    } else {
    }
    return
  }
  func.func @transform_0(%arg0: i32, %arg1: i32, %arg2: i32) -> (i32, i32, i32) {
    %c0_i32 = arith.constant 0 : i32
    %c0_i32_0 = arith.constant 0 : i32
    return %arg0, %arg1, %c0_i32 : i32, i32, i32
  }
  func.func @transform_1(%arg0: i32, %arg1: i32, %arg2: i32) -> (i32, i32, i32, i32) {
    %c0_i32 = arith.constant 0 : i32
    %c0_i32_0 = arith.constant 0 : i32
    %c0_i32_1 = arith.constant 0 : i32
    return %arg0, %c0_i32, %arg1, %c0_i32_0 : i32, i32, i32, i32
  }
  func.func @transform_2(%arg0: i32, %arg1: i32, %arg2: i32) -> (i32, i32, i32, i32) {
    %c0_i32 = arith.constant 0 : i32
    %c0_i32_0 = arith.constant 0 : i32
    %c0_i32_1 = arith.constant 0 : i32
    return %arg0, %c0_i32, %arg2, %c0_i32_0 : i32, i32, i32, i32
  }
  func.func @transform_3(%arg0: i32, %arg1: i32, %arg2: i32) -> (i32, i32, i32, i32) {
    %c0_i32 = arith.constant 0 : i32
    %c0_i32_0 = arith.constant 0 : i32
    %c0_i32_1 = arith.constant 0 : i32
    return %arg0, %c0_i32, %arg2, %c0_i32_0 : i32, i32, i32, i32
  }
  func.func @transform_4(%arg0: i32, %arg1: i32, %arg2: i32) -> (i32, i32, i32) {
    %c0_i32 = arith.constant 0 : i32
    %c0_i32_0 = arith.constant 0 : i32
    %c0_i32_1 = arith.constant 0 : i32
    %c0_i32_2 = arith.constant 0 : i32
    return %c0_i32, %c0_i32_0, %c0_i32_1 : i32, i32, i32
  }
  func.func @transform_5(%arg0: i32, %arg1: i32, %arg2: i32) -> (i32, i32) {
    %c0_i32 = arith.constant 0 : i32
    %c0_i32_0 = arith.constant 0 : i32
    %c0_i32_1 = arith.constant 0 : i32
    return %c0_i32, %c0_i32_0 : i32, i32
  }
  func.func @transform_6(%arg0: i32, %arg1: i32, %arg2: i32) -> (i32, i32) {
    %c0_i32 = arith.constant 0 : i32
    %c0_i32_0 = arith.constant 0 : i32
    %c0_i32_1 = arith.constant 0 : i32
    return %c0_i32, %c0_i32_0 : i32, i32
  }
  func.func @transform_7(%arg0: i32, %arg1: i32, %arg2: i32) -> (i32, i32) {
    %c0_i32 = arith.constant 0 : i32
    %c0_i32_0 = arith.constant 0 : i32
    %c0_i32_1 = arith.constant 0 : i32
    return %c0_i32, %c0_i32_0 : i32, i32
  }
  func.func @transform_8(%arg0: i32, %arg1: i32, %arg2: i32) -> (i32, i32) {
    %c0_i32 = arith.constant 0 : i32
    %c0_i32_0 = arith.constant 0 : i32
    %c0_i32_1 = arith.constant 0 : i32
    return %c0_i32, %c0_i32_0 : i32, i32
  }
  func.func @transform_9(%arg0: i32, %arg1: i32, %arg2: i32) -> (i32, i32) {
    %c0_i32 = arith.constant 0 : i32
    %c0_i32_0 = arith.constant 0 : i32
    %c0_i32_1 = arith.constant 0 : i32
    return %c0_i32, %c0_i32_0 : i32, i32
  }
  func.func @transform_10(%arg0: i32, %arg1: i32, %arg2: i32) -> (i32, i32) {
    %c0_i32 = arith.constant 0 : i32
    %c0_i32_0 = arith.constant 0 : i32
    %c0_i32_1 = arith.constant 0 : i32
    return %c0_i32, %c0_i32_0 : i32, i32
  }
  func.func @transform_11(%arg0: i32, %arg1: i32, %arg2: i32) -> (i32, i32) {
    %c0_i32 = arith.constant 0 : i32
    %c0_i32_0 = arith.constant 0 : i32
    %c0_i32_1 = arith.constant 0 : i32
    return %c0_i32, %c0_i32_0 : i32, i32
  }
  func.func @transform_12(%arg0: i32, %arg1: i32, %arg2: i32) -> (i32, i32, i32) {
    %c0_i32 = arith.constant 0 : i32
    %c0_i32_0 = arith.constant 0 : i32
    return %arg0, %arg1, %c0_i32 : i32, i32, i32
  }
}

</mosaic_0001>

<llo_original>
// kernel: gpt_forward.5
$region0: #{gpt_forward.5}
  #allocation0 [shape = 'u32[]', space=smem, size = 0x4, offset = 0x4, fixed_abs, tag = 'smem constant byte address 0x4 - core index']
  #allocation1 [shape = 'u32[72,128]{1,0:T(1,128)}', space=vmem, size = 0x9000, scoped, tag = 'internal scratch']
  %s0 = inlined_call_operand.vmem [shape: f32[2,8,32], index: 0, kind: input, shape index: {}]
  %s1 = inlined_call_operand.vmem [shape: f32[1,32], index: 1, kind: input, shape index: {}]
  %s2 = inlined_call_operand.vmem [shape: f32[1,32], index: 2, kind: input, shape index: {}]
  %s3 = inlined_call_operand.vmem [shape: bf16[32,96], index: 3, kind: input, shape index: {}]
  %s4 = inlined_call_operand.vmem [shape: bf16[2,8,32], index: 4, kind: output, shape index: {0}]
  %s5 = inlined_call_operand.vmem [shape: bf16[2,8,32], index: 5, kind: output, shape index: {1}]
  %s6 = inlined_call_operand.vmem [shape: bf16[2,8,32], index: 6, kind: output, shape index: {2}]
  %7 = xla_tuple %s4, %s5, %s6
  %s8 = sld [smem:[#allocation0]]
  $region65: #{gpt_forward.5} parent=0
    _
  %s10 = ssub.s32 1, %s8
  %s11 = scalar_select 0, %s10, %s8
  loop: start=0, step=1, limit=4
  $region2: #{gpt_forward.5} parent=0 // loop_pre_header
    _
  $region3: #{gpt_forward.5} parent=0 // loop_header
    %s13 = sphi 0, %s17
    %p14 = scmp.ge.s32.totalorder %s13, 4
    %s20 = sphi 0, %s32
    %s21 = sphi 0, %s28
    %s22 = sphi 0, %s20
    %s23 = sphi 0, %s21
    %s24 = sphi 0, %s22
    %s25 = sphi 0, %s23
    %s37 = sphi 0, %s39
    %s40 = sphi 0, %s37
    %s41 = sphi 0, %s40
    %s57 = sphi 0, %s41
    %s61 = sphi 0, %s61
    %s63 = sphi 0, %s61
    %s64 = sphi 0, %s63
    %s78 = sphi 0, %s64
    %s82 = sphi 0, %s82
    %s84 = sphi 0, %s82
    %s85 = sphi 0, %s84
    %s99 = sphi 0, %s85
    %s103 = sphi 0, %s103
    %s105 = sphi 0, %s103
    %s106 = sphi 0, %s105
    %s120 = sphi 0, %s106
    %s128 = sphi 0, %s130
    %s131 = sphi 0, %s128
    %s132 = sphi 0, %s131
    %s148 = sphi 0, %s132
    %s156 = sphi 0, %s158
    %s159 = sphi 0, %s156
    %s160 = sphi 0, %s159
    %s176 = sphi 0, %s160
    %s184 = sphi 0, %s186
    %s187 = sphi 0, %s184
    %s188 = sphi 0, %s187
    %s204 = sphi 0, %s188
  $region4: #{gpt_forward.5} parent=0 // loop_header_branch
    %16 = sbr.rel (%p14) target = $region8
  $region5: #{gpt_forward.5} parent=0 // loop_body
    %s18 = ssub.s32 %s13, 1
    %s19 = ssub.s32 %s13, 2
    %s26 = sadd.s32 1, %s21
    %p27 = scmp.ge.s32.totalorder %s26, 1
    %s28 = scalar_select %p27, 0, %s26
    %s29 = sadd.s32 1, %s20
    %s30 = scalar_select %p27, %s29, %s20
    %p31 = scmp.ge.s32.totalorder %s30, 2
    %s32 = scalar_select %p31, 0, %s30
    %s33 = ssub.s32 %s20, %s32
    %s34 = ssub.s32 %s21, %s28
    %s35 = sor.u32 %s33, %s34
    %p36 = scmp.eq.s32.totalorder %s35, 0
    %s38 = sadd.s32 %s37, 1
    %s39 = scalar_select %p36, %s37, %s38
    %p42 = pneg %p36
    %p43 = scmp.eq.s32.totalorder %s13, 1
    %p44 = por %p42, %p43
    %p45 = scmp.ne.s32.totalorder %s37, %s40
    %p46 = scmp.eq.s32.totalorder %s13, 0
    %p47 = por %p45, %p46
    %p48 = scmp.ne.s32.totalorder %s37, %s40
    %p49 = scmp.eq.s32.totalorder %s18, 1
    %p50 = por %p48, %p49
    %p51 = scmp.ne.s32.totalorder %s40, %s41
    %p52 = scmp.eq.s32.totalorder %s18, 0
    %p53 = por %p51, %p52
    %p54 = scmp.ne.s32.totalorder %s40, %s41
    %p55 = scmp.eq.s32.totalorder %s19, 1
    %p56 = por %p54, %p55
    %p58 = scmp.ne.s32.totalorder %s41, %s57
    %p59 = scmp.eq.s32.totalorder %s19, 0
    %p60 = por %p58, %p59
    %s62 = sadd.s32 %s61, 1
    %p65 = scmp.eq.s32.totalorder %s13, 1
    %p66 = scmp.ne.s32.totalorder %s61, %s63
    %p67 = scmp.eq.s32.totalorder %s13, 0
    %p68 = por %p66, %p67
    %p69 = scmp.ne.s32.totalorder %s61, %s63
    %p70 = scmp.eq.s32.totalorder %s18, 1
    %p71 = por %p69, %p70
    %p72 = scmp.ne.s32.totalorder %s63, %s64
    %p73 = scmp.eq.s32.totalorder %s18, 0
    %p74 = por %p72, %p73
    %p75 = scmp.ne.s32.totalorder %s63, %s64
    %p76 = scmp.eq.s32.totalorder %s19, 1
    %p77 = por %p75, %p76
    %p79 = scmp.ne.s32.totalorder %s64, %s78
    %p80 = scmp.eq.s32.totalorder %s19, 0
    %p81 = por %p79, %p80
    %s83 = sadd.s32 %s82, 1
    %p86 = scmp.eq.s32.totalorder %s13, 1
    %p87 = scmp.ne.s32.totalorder %s82, %s84
    %p88 = scmp.eq.s32.totalorder %s13, 0
    %p89 = por %p87, %p88
    %p90 = scmp.ne.s32.totalorder %s82, %s84
    %p91 = scmp.eq.s32.totalorder %s18, 1
    %p92 = por %p90, %p91
    %p93 = scmp.ne.s32.totalorder %s84, %s85
    %p94 = scmp.eq.s32.totalorder %s18, 0
    %p95 = por %p93, %p94
    %p96 = scmp.ne.s32.totalorder %s84, %s85
    %p97 = scmp.eq.s32.totalorder %s19, 1
    %p98 = por %p96, %p97
    %p100 = scmp.ne.s32.totalorder %s85, %s99
    %p101 = scmp.eq.s32.totalorder %s19, 0
    %p102 = por %p100, %p101
    %s104 = sadd.s32 %s103, 1
    %p107 = scmp.eq.s32.totalorder %s13, 1
    %p108 = scmp.ne.s32.totalorder %s103, %s105
    %p109 = scmp.eq.s32.totalorder %s13, 0
    %p110 = por %p108, %p109
    %p111 = scmp.ne.s32.totalorder %s103, %s105
    %p112 = scmp.eq.s32.totalorder %s18, 1
    %p113 = por %p111, %p112
    %p114 = scmp.ne.s32.totalorder %s105, %s106
    %p115 = scmp.eq.s32.totalorder %s18, 0
    %p116 = por %p114, %p115
    %p117 = scmp.ne.s32.totalorder %s105, %s106
    %p118 = scmp.eq.s32.totalorder %s19, 1
    %p119 = por %p117, %p118
    %p121 = scmp.ne.s32.totalorder %s106, %s120
    %p122 = scmp.eq.s32.totalorder %s19, 0
    %p123 = por %p121, %p122
    %s124 = ssub.s32 %s20, %s32
    %s125 = ssub.s32 %s21, %s28
    %s126 = sor.u32 %s124, %s125
    %p127 = scmp.eq.s32.totalorder %s126, 0
    %s129 = sadd.s32 %s128, 1
    %s130 = scalar_select %p127, %s128, %s129
    %p133 = pneg %p127
    %p134 = scmp.eq.s32.totalorder %s13, 1
    %p135 = por %p133, %p134
    %p136 = scmp.ne.s32.totalorder %s128, %s131
    %p137 = scmp.eq.s32.totalorder %s13, 0
    %p138 = por %p136, %p137
    %p139 = scmp.ne.s32.totalorder %s128, %s131
    %p140 = scmp.eq.s32.totalorder %s18, 1
    %p141 = por %p139, %p140
    %p142 = scmp.ne.s32.totalorder %s131, %s132
    %p143 = scmp.eq.s32.totalorder %s18, 0
    %p144 = por %p142, %p143
    %p145 = scmp.ne.s32.totalorder %s131, %s132
    %p146 = scmp.eq.s32.totalorder %s19, 1
    %p147 = por %p145, %p146
    %p149 = scmp.ne.s32.totalorder %s132, %s148
    %p150 = scmp.eq.s32.totalorder %s19, 0
    %p151 = por %p149, %p150
    %s152 = ssub.s32 %s20, %s32
    %s153 = ssub.s32 %s21, %s28
    %s154 = sor.u32 %s152, %s153
    %p155 = scmp.eq.s32.totalorder %s154, 0
    %s157 = sadd.s32 %s156, 1
    %s158 = scalar_select %p155, %s156, %s157
    %p161 = pneg %p155
    %p162 = scmp.eq.s32.totalorder %s13, 1
    %p163 = por %p161, %p162
    %p164 = scmp.ne.s32.totalorder %s156, %s159
    %p165 = scmp.eq.s32.totalorder %s13, 0
    %p166 = por %p164, %p165
    %p167 = scmp.ne.s32.totalorder %s156, %s159
    %p168 = scmp.eq.s32.totalorder %s18, 1
    %p169 = por %p167, %p168
    %p170 = scmp.ne.s32.totalorder %s159, %s160
    %p171 = scmp.eq.s32.totalorder %s18, 0
    %p172 = por %p170, %p171
    %p173 = scmp.ne.s32.totalorder %s159, %s160
    %p174 = scmp.eq.s32.totalorder %s19, 1
    %p175 = por %p173, %p174
    %p177 = scmp.ne.s32.totalorder %s160, %s176
    %p178 = scmp.eq.s32.totalorder %s19, 0
    %p179 = por %p177, %p178
    %s180 = ssub.s32 %s20, %s32
    %s181 = ssub.s32 %s21, %s28
    %s182 = sor.u32 %s180, %s181
    %p183 = scmp.eq.s32.totalorder %s182, 0
    %s185 = sadd.s32 %s184, 1
    %s186 = scalar_select %p183, %s184, %s185
    %p189 = pneg %p183
    %p190 = scmp.eq.s32.totalorder %s13, 1
    %p191 = por %p189, %p190
    %p192 = scmp.ne.s32.totalorder %s184, %s187
    %p193 = scmp.eq.s32.totalorder %s13, 0
    %p194 = por %p192, %p193
    %p195 = scmp.ne.s32.totalorder %s184, %s187
    %p196 = scmp.eq.s32.totalorder %s18, 1
    %p197 = por %p195, %p196
    %p198 = scmp.ne.s32.totalorder %s187, %s188
    %p199 = scmp.eq.s32.totalorder %s18, 0
    %p200 = por %p198, %p199
    %p201 = scmp.ne.s32.totalorder %s187, %s188
    %p202 = scmp.eq.s32.totalorder %s19, 1
    %p203 = por %p201, %p202
    %p205 = scmp.ne.s32.totalorder %s188, %s204
    %p206 = scmp.eq.s32.totalorder %s19, 0
    %p207 = por %p205, %p206
    %p208 = scmp.le.s32.totalorder 1, %s13
    %p209 = scmp.lt.s32.totalorder %s13, 3
    %p210 = pnand %p208, %p209
    %p211 = pneg %p210
    // Predicated region
    $region9: #{gpt_forward.5} parent=5 // pred_check
      _
    $region10: #{gpt_forward.5} parent=5 // pred_check_branch
      %213 = sbr.rel (%p210) target = $region12
    $region11: #{gpt_forward.5} parent=5 // pred_region
      %s214 = ssub.s32 %s13, 1
      // Predicated region
      $region13: #{gpt_forward.5} parent=11 // pred_check
        %p215 = pneg %p74
      $region14: #{gpt_forward.5} parent=11 // pred_check_branch
        %217 = sbr.rel (%p215) target = $region16
      $region15: #{gpt_forward.5} parent=11 // pred_region
        _
      $region16: #{gpt_forward.5} parent=11 // pred_fallthru
        _
      // Predicated region
      $region17: #{gpt_forward.5} parent=11 // pred_check
        %p218 = pneg %p95
      $region18: #{gpt_forward.5} parent=11 // pred_check_branch
        %220 = sbr.rel (%p218) target = $region20
      $region19: #{gpt_forward.5} parent=11 // pred_region
        _
      $region20: #{gpt_forward.5} parent=11 // pred_fallthru
        _
      // Predicated region
      $region21: #{gpt_forward.5} parent=11 // pred_check
        %p221 = pneg %p116
      $region22: #{gpt_forward.5} parent=11 // pred_check_branch
        %223 = sbr.rel (%p221) target = $region24
      $region23: #{gpt_forward.5} parent=11 // pred_region
        _
      $region24: #{gpt_forward.5} parent=11 // pred_fallthru
        _
    $region12: #{gpt_forward.5} parent=5 // pred_fallthru
      _
    %p224 = scmp.lt.s32.totalorder %s13, 2
    // Predicated region
    $region25: #{gpt_forward.5} parent=5 // pred_check
      %p225 = pneg %p224
    $region26: #{gpt_forward.5} parent=5 // pred_check_branch
      %227 = sbr.rel (%p225) target = $region28
    $region27: #{gpt_forward.5} parent=5 // pred_region
      // Predicated region
      $region29: #{gpt_forward.5} parent=27 // pred_check
        %p228 = pneg %p47
      $region30: #{gpt_forward.5} parent=27 // pred_check_branch
        %230 = sbr.rel (%p228) target = $region32
      $region31: #{gpt_forward.5} parent=27 // pred_region
        %p231 = scmp.lt.s32.totalorder %s20, 1
        %s232 = scalar_select %p231, %s20, 1
        %p233 = scmp.lt.s32.totalorder %s21, 0
        %s234 = scalar_select %p233, %s21, 0
        %s235 = sadd.s32 %s234, %s232
        %s236 = smul.addr %s235, 8
        %s237 = scalar_lea.vmem %s0, %s236
      $region32: #{gpt_forward.5} parent=27 // pred_fallthru
        _
    $region28: #{gpt_forward.5} parent=5 // pred_fallthru
      _
    %p238 = scmp.le.s32.totalorder 1, %s13
    %p239 = scmp.lt.s32.totalorder %s13, 3
    %p240 = pnand %p238, %p239
    %p241 = pneg %p240
    // Predicated region
    $region33: #{gpt_forward.5} parent=5 // pred_check
      _
    $region34: #{gpt_forward.5} parent=5 // pred_check_branch
      %243 = sbr.rel (%p240) target = $region36
    $region35: #{gpt_forward.5} parent=5 // pred_region
      %s244 = ssub.s32 %s13, 1
      %p245 = scmp.lt.s32.totalorder %s22, 1
      %s246 = scalar_select %p245, %s22, 1
      %p247 = scmp.lt.s32.totalorder %s23, 0
      %s248 = scalar_select %p247, %s23, 0
      %s249 = sadd.s32 %s248, %s246
      %s250 = smul.addr %s249, 8
      %s251 = scalar_lea.vmem %s0, %s250
      %p252 = pneg %p53
      %p253 = pneg %p50
      %p254 = pneg %p74
      %p255 = pneg %p71
      %p256 = pneg %p95
      %p257 = pneg %p92
      %p258 = pneg %p116
      %p259 = pneg %p113
      %p260 = pneg %p144
      %p261 = pneg %p141
      %p262 = scmp.lt.s32.totalorder %s22, 1
      %s263 = scalar_select %p262, %s22, 1
      %p264 = scmp.lt.s32.totalorder %s23, 0
      %s265 = scalar_select %p264, %s23, 0
      %s266 = sadd.s32 %s265, %s263
      %s267 = smul.addr %s266, 4
      %s268 = scalar_lea.vmem %s4, %s267
      %p269 = pneg %p172
      %p270 = pneg %p169
      %p271 = scmp.lt.s32.totalorder %s22, 1
      %s272 = scalar_select %p271, %s22, 1
      %p273 = scmp.lt.s32.totalorder %s23, 0
      %s274 = scalar_select %p273, %s23, 0
      %s275 = sadd.s32 %s274, %s272
      %s276 = smul.addr %s275, 4
      %s277 = scalar_lea.vmem %s5, %s276
      %p278 = pneg %p200
      %p279 = pneg %p197
      %p280 = scmp.lt.s32.totalorder %s22, 1
      %s281 = scalar_select %p280, %s22, 1
      %p282 = scmp.lt.s32.totalorder %s23, 0
      %s283 = scalar_select %p282, %s23, 0
      %s284 = sadd.s32 %s283, %s281
      %s285 = smul.addr %s284, 4
      %s286 = scalar_lea.vmem %s6, %s285
      %p287 = scmp.lt.s32.totalorder %s22, 1
      %s288 = scalar_select %p287, %s22, 1
      %p289 = scmp.lt.s32.totalorder %s23, 0
      %s290 = scalar_select %p289, %s23, 0
      %s291 = sadd.s32 %s290, %s288
      %s292 = smul.addr %s291, 8
      %s293 = scalar_lea.vmem %s0, %s292
      %p294 = scmp.lt.s32.totalorder %s22, 1
      %s295 = scalar_select %p294, %s22, 1
      %p296 = scmp.lt.s32.totalorder %s23, 0
      %s297 = scalar_select %p296, %s23, 0
      %s298 = sadd.s32 %s297, %s295
      %s299 = smul.addr %s298, 4
      %s300 = scalar_lea.vmem %s4, %s299
      %p301 = scmp.lt.s32.totalorder %s22, 1
      %s302 = scalar_select %p301, %s22, 1
      %p303 = scmp.lt.s32.totalorder %s23, 0
      %s304 = scalar_select %p303, %s23, 0
      %s305 = sadd.s32 %s304, %s302
      %s306 = smul.addr %s305, 4
      %s307 = scalar_lea.vmem %s5, %s306
      %p308 = scmp.lt.s32.totalorder %s22, 1
      %s309 = scalar_select %p308, %s22, 1
      %p310 = scmp.lt.s32.totalorder %s23, 0
      %s311 = scalar_select %p310, %s23, 0
      %s312 = sadd.s32 %s311, %s309
      %s313 = smul.addr %s312, 4
      %s314 = scalar_lea.vmem %s6, %s313
      %v316 = vld [vmem:[%s293] sm:$0xff]
      %v317 = vld [vmem:[%s1] sm:$0x1]
      %v318 = vld [vmem:[%s2] sm:$0x1]
      %vm319 = vcmask 261120
      %v320 = vsel %vm319, %v316, 0.0
      %321 = vadd.xlane.f32.xlu0 %v320
      %v322 = vpop.xlane.xlu0 %321
      %v323 = vrcp.pop 32.0
      %v324 = vmul.f32 32.0, %v323
      %v325 = vsub.f32 1.0, %v324
      %v326 = vmul.f32 %v323, %v325
      %v327 = vadd.f32 %v323, %v326
      %vm328 = vweird.f32 %v323
      %v329 = vsel %vm328, %v323, %v327
      %v330 = vmul.f32 %v322, %v329
      %v331 = vsub.f32 %v316, %v330
      %v332 = vmul.f32 %v331, %v331
      %v333 = vsel %vm319, %v332, 0.0
      %334 = vadd.xlane.f32.xlu0 %v333
      %v335 = vpop.xlane.xlu0 %334
      %v336 = vmul.f32 %v335, %v329
      %v337 = vadd.f32 %v336, 1e-05
      %v338 = vrsqrt.pop %v337
      %v339 = vmul.f32 %v338, %v337
      %v340 = vmul.f32 %v339, %v338
      %v341 = vmul.f32 0.5, %v340
      %v342 = vsub.f32 1.5, %v341
      %v343 = vmul.f32 %v338, %v342
      %vm344 = vweird.f32 %v337
      %vm345 = vweird.f32 %v338
      %vm346 = vmor %vm344, %vm345
      %v347 = vsel %vm346, %v338, %v343
      %v348 = vmul.f32 %v331, %v347
      %v350 = vperm.slane %v317, 0
      %v352 = vmul.f32 %v348, %v350
      %v354 = vperm.slane %v318, 0
      %v356 = vadd.f32 %v352, %v354
      %v357 = vpack.c.bf16 %v356, %v356
      %v358 = vld [vmem:[%s3] sm:$0xf]
      %v359 = vld [vmem:[%s3 + $0x4] sm:$0xf]
      %v360 = vld [vmem:[%s3 + $0x8] sm:$0xf]
      %v361 = vld [vmem:[%s3 + $0xc] sm:$0xf]
      %v366 = vunpack.c.l.b16 %v358
      %v367 = vunpack.c.l.b16 %v359
      %v368 = vunpack.c.l.b16 %v360
      %v369 = vunpack.c.l.b16 %v361
      %v370 = vpack.c.b16 %v367, %v366
      %v371 = vpack.c.b16 %v369, %v368
      %v375 = vsel %vm319, %v357, 0
      %377 = vmatpush.bf16.msra.mxu0 0
      %378 = vmatpush.bf16.msra.mxu0 0
      %379 = vmatpush.bf16.msra.mxu0 0
      %380 = vmatpush.bf16.msra.mxu0 0
      %381 = vmatpush.bf16.msra.mxu0 0
      %382 = vmatpush.bf16.msra.mxu0 0
      %383 = vmatpush.bf16.msra.mxu0 %v371
      %384 = vmatpush.bf16.msra.mxu0 %v370
      %385 = vmatmul.bf16.gmra.mxu0 %v375
      %v386 = vpop.f32.mrf.mxu0
      %v387 = vadd.f32 0.0, %v386
      %v388 = vpop.f32.mrf.mxu0
      %389 = vdwg.mxu0
      %v390 = vmul.f32 %v387, 0.35355338
      %v391 = vpack.c.bf16 %v390, %v390
      %vm392 = vcmask 257024
      %393 = vst.msk [vmem:[%s300] sm:$0xf] %vm392, %v391
      %v394 = vpack.c.bf16 %v387, %v387
      %396 = vrot.lane.b32.xlu0 %v394, 96
      %v397 = vpop.permute.xlu0 %396
      %399 = vst.msk [vmem:[%s307] sm:$0xf] %vm392, %v397
      %400 = vrot.lane.b32.xlu0 %v394, 64
      %v401 = vpop.permute.xlu0 %400
      %403 = vst.msk [vmem:[%s314] sm:$0xf] %vm392, %v401
      %p404 = scmp.lt.s32.totalorder %s22, 1
      %s405 = scalar_select %p404, %s22, 1
      %p406 = scmp.lt.s32.totalorder %s23, 0
      %s407 = scalar_select %p406, %s23, 0
      %s408 = sadd.s32 %s407, %s405
      %s409 = smul.addr %s408, 4
      %s410 = scalar_lea.vmem %s4, %s409
      %p411 = scmp.lt.s32.totalorder %s22, 1
      %s412 = scalar_select %p411, %s22, 1
      %p413 = scmp.lt.s32.totalorder %s23, 0
      %s414 = scalar_select %p413, %s23, 0
      %s415 = sadd.s32 %s414, %s412
      %s416 = smul.addr %s415, 4
      %s417 = scalar_lea.vmem %s5, %s416
      %p418 = scmp.lt.s32.totalorder %s22, 1
      %s419 = scalar_select %p418, %s22, 1
      %p420 = scmp.lt.s32.totalorder %s23, 0
      %s421 = scalar_select %p420, %s23, 0
      %s422 = sadd.s32 %s421, %s419
      %s423 = smul.addr %s422, 4
      %s424 = scalar_lea.vmem %s6, %s423
      // Predicated region
      $region37: #{gpt_forward.5} parent=35 // pred_check
        %p425 = pneg %p141
      $region38: #{gpt_forward.5} parent=35 // pred_check_branch
        %427 = sbr.rel (%p425) target = $region40
      $region39: #{gpt_forward.5} parent=35 // pred_region
        _
      $region40: #{gpt_forward.5} parent=35 // pred_fallthru
        _
      // Predicated region
      $region41: #{gpt_forward.5} parent=35 // pred_check
        %p428 = pneg %p169
      $region42: #{gpt_forward.5} parent=35 // pred_check_branch
        %430 = sbr.rel (%p428) target = $region44
      $region43: #{gpt_forward.5} parent=35 // pred_region
        _
      $region44: #{gpt_forward.5} parent=35 // pred_fallthru
        _
      // Predicated region
      $region45: #{gpt_forward.5} parent=35 // pred_check
        %p431 = pneg %p197
      $region46: #{gpt_forward.5} parent=35 // pred_check_branch
        %433 = sbr.rel (%p431) target = $region48
      $region47: #{gpt_forward.5} parent=35 // pred_region
        _
      $region48: #{gpt_forward.5} parent=35 // pred_fallthru
        _
    $region36: #{gpt_forward.5} parent=5 // pred_fallthru
      _
    %p434 = scmp.le.s32.totalorder 2, %s13
    // Predicated region
    $region49: #{gpt_forward.5} parent=5 // pred_check
      %p435 = pneg %p434
    $region50: #{gpt_forward.5} parent=5 // pred_check_branch
      %437 = sbr.rel (%p435) target = $region52
    $region51: #{gpt_forward.5} parent=5 // pred_region
      %s438 = ssub.s32 %s13, 2
      // Predicated region
      $region53: #{gpt_forward.5} parent=51 // pred_check
        %p439 = pneg %p147
      $region54: #{gpt_forward.5} parent=51 // pred_check_branch
        %441 = sbr.rel (%p439) target = $region56
      $region55: #{gpt_forward.5} parent=51 // pred_region
        %p442 = scmp.lt.s32.totalorder %s24, 1
        %s443 = scalar_select %p442, %s24, 1
        %p444 = scmp.lt.s32.totalorder %s25, 0
        %s445 = scalar_select %p444, %s25, 0
        %s446 = sadd.s32 %s445, %s443
        %s447 = smul.addr %s446, 4
        %s448 = scalar_lea.vmem %s4, %s447
      $region56: #{gpt_forward.5} parent=51 // pred_fallthru
        _
      // Predicated region
      $region57: #{gpt_forward.5} parent=51 // pred_check
        %p449 = pneg %p175
      $region58: #{gpt_forward.5} parent=51 // pred_check_branch
        %451 = sbr.rel (%p449) target = $region60
      $region59: #{gpt_forward.5} parent=51 // pred_region
        %p452 = scmp.lt.s32.totalorder %s24, 1
        %s453 = scalar_select %p452, %s24, 1
        %p454 = scmp.lt.s32.totalorder %s25, 0
        %s455 = scalar_select %p454, %s25, 0
        %s456 = sadd.s32 %s455, %s453
        %s457 = smul.addr %s456, 4
        %s458 = scalar_lea.vmem %s5, %s457
      $region60: #{gpt_forward.5} parent=51 // pred_fallthru
        _
      // Predicated region
      $region61: #{gpt_forward.5} parent=51 // pred_check
        %p459 = pneg %p203
      $region62: #{gpt_forward.5} parent=51 // pred_check_branch
        %461 = sbr.rel (%p459) target = $region64
      $region63: #{gpt_forward.5} parent=51 // pred_region
        %p462 = scmp.lt.s32.totalorder %s24, 1
        %s463 = scalar_select %p462, %s24, 1
        %p464 = scmp.lt.s32.totalorder %s25, 0
        %s465 = scalar_select %p464, %s25, 0
        %s466 = sadd.s32 %s465, %s463
        %s467 = smul.addr %s466, 4
        %s468 = scalar_lea.vmem %s6, %s467
      $region64: #{gpt_forward.5} parent=51 // pred_fallthru
        _
    $region52: #{gpt_forward.5} parent=5 // pred_fallthru
      _
  $region6: #{gpt_forward.5} parent=0 // loop_footer
    %s17 = sadd.s32 1, %s13
  $region7: #{gpt_forward.5} parent=0 // loop_footer_branch
    %12 = sbr.rel target = $region3
  $region8: #{gpt_forward.5} parent=0 // loop_exit
    _

// kernel: gpt_forward.9
$region0: #{gpt_forward.9}
  #allocation0 [shape = 'u32[]', space=smem, size = 0x4, offset = 0x4, fixed_abs, tag = 'smem constant byte address 0x4 - core index']
  #allocation1 [shape = 'u32[72,128]{1,0:T(1,128)}', space=vmem, size = 0x9000, scoped, tag = 'internal scratch']
  %s0 = inlined_call_operand.vmem [shape: f32[2,8,32], index: 0, kind: input, shape index: {}]
  %s1 = inlined_call_operand.vmem [shape: f32[1,32], index: 1, kind: input, shape index: {}]
  %s2 = inlined_call_operand.vmem [shape: f32[1,32], index: 2, kind: input, shape index: {}]
  %s3 = inlined_call_operand.vmem [shape: bf16[32,64], index: 3, kind: input, shape index: {}]
  %s4 = inlined_call_operand.hbm [shape: f32[2,8,64], index: 4, kind: output, shape index: {}]
  %s5 = sld [smem:[#allocation0]]
  $region49: #{gpt_forward.9} parent=0
    _
  %s7 = ssub.s32 1, %s5
  %s8 = scalar_select 0, %s7, %s5
  $region1: #{gpt_forward.9} parent=0
    #allocation2 [shape = 'u8[8192]{0}', space=vmem, size = 0x2000, scoped, tag = 'output window, operand 0']
    #allocation3 [shape = 's32[2]{0}', space=sflag, size = 0x8, scoped, tag = 'scoped memory for gpt_forward.9']
    %9 = vsyncpa [#allocation3], 0
    %s10 = scalar_lea.sflag [#allocation3], 1
    %11 = vsyncpa %s10, 0
    loop: start=0, step=1, limit=4
    $region2: #{gpt_forward.9} parent=1 // loop_pre_header
      _
    $region3: #{gpt_forward.9} parent=1 // loop_header
      %s13 = sphi 0, %s17
      %p14 = scmp.ge.s32.totalorder %s13, 4
      %s20 = sphi 0, %s39
      %s21 = sphi 0, %s35
      %s22 = sphi 0, %s31
      %s23 = sphi 0, %s20
      %s24 = sphi 0, %s21
      %s25 = sphi 0, %s22
      %s26 = sphi 0, %s23
      %s27 = sphi 0, %s24
      %s28 = sphi 0, %s25
      %s44 = sphi 0, %s46
      %s47 = sphi 0, %s44
      %s48 = sphi 0, %s47
      %s64 = sphi 0, %s48
      %s68 = sphi 0, %s68
      %s70 = sphi 0, %s68
      %s71 = sphi 0, %s70
      %s85 = sphi 0, %s71
      %s89 = sphi 0, %s89
      %s91 = sphi 0, %s89
      %s92 = sphi 0, %s91
      %s106 = sphi 0, %s92
      %s112 = sphi 0, %s114
      %s115 = sphi 0, %s112
      %s116 = sphi 0, %s115
      %s132 = sphi 0, %s116
      %s142 = sphi 0, %s144
      %s145 = sphi 0, %s142
      %s146 = sphi 0, %s145
      %s162 = sphi 0, %s146
    $region4: #{gpt_forward.9} parent=1 // loop_header_branch
      %16 = sbr.rel (%p14) target = $region8
    $region5: #{gpt_forward.9} parent=1 // loop_body
      %s18 = ssub.s32 %s13, 1
      %s19 = ssub.s32 %s13, 2
      %s29 = sadd.s32 1, %s22
      %p30 = scmp.ge.s32.totalorder %s29, 1
      %s31 = scalar_select %p30, 0, %s29
      %s32 = sadd.s32 1, %s21
      %s33 = scalar_select %p30, %s32, %s21
      %p34 = scmp.ge.s32.totalorder %s33, 1
      %s35 = scalar_select %p34, 0, %s33
      %s36 = sadd.s32 1, %s20
      %s37 = scalar_select %p34, %s36, %s20
      %p38 = scmp.ge.s32.totalorder %s37, 2
      %s39 = scalar_select %p38, 0, %s37
      %s40 = ssub.s32 %s20, %s39
      %s41 = ssub.s32 %s21, %s35
      %s42 = sor.u32 %s40, %s41
      %p43 = scmp.eq.s32.totalorder %s42, 0
      %s45 = sadd.s32 %s44, 1
      %s46 = scalar_select %p43, %s44, %s45
      %p49 = pneg %p43
      %p50 = scmp.eq.s32.totalorder %s13, 1
      %p51 = por %p49, %p50
      %p52 = scmp.ne.s32.totalorder %s44, %s47
      %p53 = scmp.eq.s32.totalorder %s13, 0
      %p54 = por %p52, %p53
      %p55 = scmp.ne.s32.totalorder %s44, %s47
      %p56 = scmp.eq.s32.totalorder %s18, 1
      %p57 = por %p55, %p56
      %p58 = scmp.ne.s32.totalorder %s47, %s48
      %p59 = scmp.eq.s32.totalorder %s18, 0
      %p60 = por %p58, %p59
      %p61 = scmp.ne.s32.totalorder %s47, %s48
      %p62 = scmp.eq.s32.totalorder %s19, 1
      %p63 = por %p61, %p62
      %p65 = scmp.ne.s32.totalorder %s48, %s64
      %p66 = scmp.eq.s32.totalorder %s19, 0
      %p67 = por %p65, %p66
      %s69 = sadd.s32 %s68, 1
      %p72 = scmp.eq.s32.totalorder %s13, 1
      %p73 = scmp.ne.s32.totalorder %s68, %s70
      %p74 = scmp.eq.s32.totalorder %s13, 0
      %p75 = por %p73, %p74
      %p76 = scmp.ne.s32.totalorder %s68, %s70
      %p77 = scmp.eq.s32.totalorder %s18, 1
      %p78 = por %p76, %p77
      %p79 = scmp.ne.s32.totalorder %s70, %s71
      %p80 = scmp.eq.s32.totalorder %s18, 0
      %p81 = por %p79, %p80
      %p82 = scmp.ne.s32.totalorder %s70, %s71
      %p83 = scmp.eq.s32.totalorder %s19, 1
      %p84 = por %p82, %p83
      %p86 = scmp.ne.s32.totalorder %s71, %s85
      %p87 = scmp.eq.s32.totalorder %s19, 0
      %p88 = por %p86, %p87
      %s90 = sadd.s32 %s89, 1
      %p93 = scmp.eq.s32.totalorder %s13, 1
      %p94 = scmp.ne.s32.totalorder %s89, %s91
      %p95 = scmp.eq.s32.totalorder %s13, 0
      %p96 = por %p94, %p95
      %p97 = scmp.ne.s32.totalorder %s89, %s91
      %p98 = scmp.eq.s32.totalorder %s18, 1
      %p99 = por %p97, %p98
      %p100 = scmp.ne.s32.totalorder %s91, %s92
      %p101 = scmp.eq.s32.totalorder %s18, 0
      %p102 = por %p100, %p101
      %p103 = scmp.ne.s32.totalorder %s91, %s92
      %p104 = scmp.eq.s32.totalorder %s19, 1
      %p105 = por %p103, %p104
      %p107 = scmp.ne.s32.totalorder %s92, %s106
      %p108 = scmp.eq.s32.totalorder %s19, 0
      %p109 = por %p107, %p108
      %s110 = ssub.s32 %s22, %s31
      %p111 = scmp.eq.s32.totalorder %s110, 0
      %s113 = sadd.s32 %s112, 1
      %s114 = scalar_select %p111, %s112, %s113
      %p117 = pneg %p111
      %p118 = scmp.eq.s32.totalorder %s13, 1
      %p119 = por %p117, %p118
      %p120 = scmp.ne.s32.totalorder %s112, %s115
      %p121 = scmp.eq.s32.totalorder %s13, 0
      %p122 = por %p120, %p121
      %p123 = scmp.ne.s32.totalorder %s112, %s115
      %p124 = scmp.eq.s32.totalorder %s18, 1
      %p125 = por %p123, %p124
      %p126 = scmp.ne.s32.totalorder %s115, %s116
      %p127 = scmp.eq.s32.totalorder %s18, 0
      %p128 = por %p126, %p127
      %p129 = scmp.ne.s32.totalorder %s115, %s116
      %p130 = scmp.eq.s32.totalorder %s19, 1
      %p131 = por %p129, %p130
      %p133 = scmp.ne.s32.totalorder %s116, %s132
      %p134 = scmp.eq.s32.totalorder %s19, 0
      %p135 = por %p133, %p134
      %s136 = ssub.s32 %s20, %s39
      %s137 = ssub.s32 %s21, %s35
      %s138 = sor.u32 %s136, %s137
      %s139 = ssub.s32 %s22, %s31
      %s140 = sor.u32 %s138, %s139
      %p141 = scmp.eq.s32.totalorder %s140, 0
      %s143 = sadd.s32 %s142, 1
      %s144 = scalar_select %p141, %s142, %s143
      %p147 = pneg %p141
      %p148 = scmp.eq.s32.totalorder %s13, 1
      %p149 = por %p147, %p148
      %p150 = scmp.ne.s32.totalorder %s142, %s145
      %p151 = scmp.eq.s32.totalorder %s13, 0
      %p152 = por %p150, %p151
      %p153 = scmp.ne.s32.totalorder %s142, %s145
      %p154 = scmp.eq.s32.totalorder %s18, 1
      %p155 = por %p153, %p154
      %p156 = scmp.ne.s32.totalorder %s145, %s146
      %p157 = scmp.eq.s32.totalorder %s18, 0
      %p158 = por %p156, %p157
      %p159 = scmp.ne.s32.totalorder %s145, %s146
      %p160 = scmp.eq.s32.totalorder %s19, 1
      %p161 = por %p159, %p160
      %p163 = scmp.ne.s32.totalorder %s146, %s162
      %p164 = scmp.eq.s32.totalorder %s19, 0
      %p165 = por %p163, %p164
      %p166 = scmp.le.s32.totalorder 1, %s13
      %p167 = scmp.lt.s32.totalorder %s13, 3
      %p168 = pnand %p166, %p167
      %p169 = pneg %p168
      // Predicated region
      $region9: #{gpt_forward.9} parent=5 // pred_check
        _
      $region10: #{gpt_forward.9} parent=5 // pred_check_branch
        %171 = sbr.rel (%p168) target = $region12
      $region11: #{gpt_forward.9} parent=5 // pred_region
        %s172 = ssub.s32 %s13, 1
        // Predicated region
        $region13: #{gpt_forward.9} parent=11 // pred_check
          %p173 = pneg %p81
        $region14: #{gpt_forward.9} parent=11 // pred_check_branch
          %175 = sbr.rel (%p173) target = $region16
        $region15: #{gpt_forward.9} parent=11 // pred_region
          _
        $region16: #{gpt_forward.9} parent=11 // pred_fallthru
          _
        // Predicated region
        $region17: #{gpt_forward.9} parent=11 // pred_check
          %p176 = pneg %p102
        $region18: #{gpt_forward.9} parent=11 // pred_check_branch
          %178 = sbr.rel (%p176) target = $region20
        $region19: #{gpt_forward.9} parent=11 // pred_region
          _
        $region20: #{gpt_forward.9} parent=11 // pred_fallthru
          _
        // Predicated region
        $region21: #{gpt_forward.9} parent=11 // pred_check
          %p179 = pneg %p128
        $region22: #{gpt_forward.9} parent=11 // pred_check_branch
          %181 = sbr.rel (%p179) target = $region24
        $region23: #{gpt_forward.9} parent=11 // pred_region
          %p182 = scmp.lt.s32.totalorder %s25, 0
          %s183 = scalar_select %p182, %s25, 0
          %s184 = smul.addr %s183, 4
          %s185 = scalar_lea.vmem %s3, %s184
        $region24: #{gpt_forward.9} parent=11 // pred_fallthru
          _
      $region12: #{gpt_forward.9} parent=5 // pred_fallthru
        _
      %p186 = scmp.lt.s32.totalorder %s13, 2
      // Predicated region
      $region25: #{gpt_forward.9} parent=5 // pred_check
        %p187 = pneg %p186
      $region26: #{gpt_forward.9} parent=5 // pred_check_branch
        %189 = sbr.rel (%p187) target = $region28
      $region27: #{gpt_forward.9} parent=5 // pred_region
        // Predicated region
        $region29: #{gpt_forward.9} parent=27 // pred_check
          %p190 = pneg %p54
        $region30: #{gpt_forward.9} parent=27 // pred_check_branch
          %192 = sbr.rel (%p190) target = $region32
        $region31: #{gpt_forward.9} parent=27 // pred_region
          %p193 = scmp.lt.s32.totalorder %s20, 1
          %s194 = scalar_select %p193, %s20, 1
          %p195 = scmp.lt.s32.totalorder %s21, 0
          %s196 = scalar_select %p195, %s21, 0
          %s197 = sadd.s32 %s196, %s194
          %s198 = smul.addr %s197, 8
          %s199 = scalar_lea.vmem %s0, %s198
        $region32: #{gpt_forward.9} parent=27 // pred_fallthru
          _
      $region28: #{gpt_forward.9} parent=5 // pred_fallthru
        _
      %p200 = scmp.le.s32.totalorder 1, %s13
      %p201 = scmp.lt.s32.totalorder %s13, 3
      %p202 = pnand %p200, %p201
      %p203 = pneg %p202
      // Predicated region
      $region33: #{gpt_forward.9} parent=5 // pred_check
        _
      $region34: #{gpt_forward.9} parent=5 // pred_check_branch
        %205 = sbr.rel (%p202) target = $region36
      $region35: #{gpt_forward.9} parent=5 // pred_region
        %s206 = ssub.s32 %s13, 1
        %p207 = scmp.lt.s32.totalorder %s23, 1
        %s208 = scalar_select %p207, %s23, 1
        %p209 = scmp.lt.s32.totalorder %s24, 0
        %s210 = scalar_select %p209, %s24, 0
        %s211 = sadd.s32 %s210, %s208
        %s212 = smul.addr %s211, 8
        %s213 = scalar_lea.vmem %s0, %s212
        %p214 = pneg %p60
        %p215 = pneg %p57
        %p216 = pneg %p81
        %p217 = pneg %p78
        %p218 = pneg %p102
        %p219 = pneg %p99
        %p220 = scmp.lt.s32.totalorder %s25, 0
        %s221 = scalar_select %p220, %s25, 0
        %s222 = smul.addr %s221, 4
        %s223 = scalar_lea.vmem %s3, %s222
        %p224 = pneg %p128
        %p225 = pneg %p125
        %p226 = pneg %p158
        %p227 = pneg %p155
        %s228 = sand.u32 %s145, 1
        %s229 = scalar_lea.sflag [#allocation3], %s228
        %s230 = sand.u32 %s145, 1
        %s231 = smul.addr %s230, 8
        %s232 = scalar_lea.vmem [#allocation2], %s231
        %p233 = scmp.lt.s32.totalorder %s23, 1
        %s234 = scalar_select %p233, %s23, 1
        %p235 = scmp.lt.s32.totalorder %s24, 0
        %s236 = scalar_select %p235, %s24, 0
        %s237 = sadd.s32 %s236, %s234
        %s238 = smul.addr %s237, 8
        %s239 = scalar_lea.vmem %s0, %s238
        %p240 = scmp.lt.s32.totalorder %s25, 0
        %s241 = scalar_select %p240, %s25, 0
        %s242 = smul.addr %s241, 4
        %s243 = scalar_lea.vmem %s3, %s242
        %v245 = vld [vmem:[%s239] sm:$0xff]
        %v246 = vld [vmem:[%s1] sm:$0x1]
        %v247 = vld [vmem:[%s2] sm:$0x1]
        %vm248 = vcmask 261120
        %v249 = vsel %vm248, %v245, 0.0
        %250 = vadd.xlane.f32.xlu0 %v249
        %v251 = vpop.xlane.xlu0 %250
        %v252 = vrcp.pop 32.0
        %v253 = vmul.f32 32.0, %v252
        %v254 = vsub.f32 1.0, %v253
        %v255 = vmul.f32 %v252, %v254
        %v256 = vadd.f32 %v252, %v255
        %vm257 = vweird.f32 %v252
        %v258 = vsel %vm257, %v252, %v256
        %v259 = vmul.f32 %v251, %v258
        %v260 = vsub.f32 %v245, %v259
        %v261 = vmul.f32 %v260, %v260
        %v262 = vsel %vm248, %v261, 0.0
        %263 = vadd.xlane.f32.xlu0 %v262
        %v264 = vpop.xlane.xlu0 %263
        %v265 = vmul.f32 %v264, %v258
        %v266 = vadd.f32 %v265, 1e-05
        %v267 = vrsqrt.pop %v266
        %v268 = vmul.f32 %v267, %v266
        %v269 = vmul.f32 %v268, %v267
        %v270 = vmul.f32 0.5, %v269
        %v271 = vsub.f32 1.5, %v270
        %v272 = vmul.f32 %v267, %v271
        %vm273 = vweird.f32 %v266
        %vm274 = vweird.f32 %v267
        %vm275 = vmor %vm273, %vm274
        %v276 = vsel %vm275, %v267, %v272
        %v277 = vmul.f32 %v260, %v276
        %v279 = vperm.slane %v246, 0
        %v281 = vmul.f32 %v277, %v279
        %v283 = vperm.slane %v247, 0
        %v285 = vadd.f32 %v281, %v283
        %v286 = vpack.c.bf16 %v285, %v285
        %v287 = vld [vmem:[%s243] sm:$0xf]
        %v288 = vld [vmem:[%s243 + $0x4] sm:$0xf]
        %v289 = vld [vmem:[%s243 + $0x8] sm:$0xf]
        %v290 = vld [vmem:[%s243 + $0xc] sm:$0xf]
        %v295 = vunpack.c.l.b16 %v287
        %v296 = vunpack.c.l.b16 %v288
        %v297 = vunpack.c.l.b16 %v289
        %v298 = vunpack.c.l.b16 %v290
        %v299 = vpack.c.b16 %v296, %v295
        %v300 = vpack.c.b16 %v298, %v297
        %v304 = vsel %vm248, %v286, 0
        %306 = vmatpush.bf16.msra.mxu0 0
        %307 = vmatpush.bf16.msra.mxu0 0
        %308 = vmatpush.bf16.msra.mxu0 0
        %309 = vmatpush.bf16.msra.mxu0 0
        %310 = vmatpush.bf16.msra.mxu0 0
        %311 = vmatpush.bf16.msra.mxu0 0
        %312 = vmatpush.bf16.msra.mxu0 %v300
        %313 = vmatpush.bf16.msra.mxu0 %v299
        %314 = vmatmul.bf16.gmra.mxu0 %v304
        %v315 = vpop.f32.mrf.mxu0
        %v316 = vadd.f32 0.0, %v315
        %v317 = vpop.f32.mrf.mxu0
        %318 = vdwg.mxu0
        %vm319 = vcmask 523264
        %320 = vst.msk [vmem:[%s232] sm:$0xff] %vm319, %v316
        %s321 = sand.u32 %s145, 1
        %s322 = scalar_lea.sflag [#allocation3], %s321
        %s323 = sand.u32 %s145, 1
        %s324 = smul.addr %s323, 8
        %s325 = scalar_lea.vmem [#allocation2], %s324
        // Predicated region
        $region37: #{gpt_forward.9} parent=35 // pred_check
          %p326 = pneg %p155
        $region38: #{gpt_forward.9} parent=35 // pred_check_branch
          %328 = sbr.rel (%p326) target = $region40
        $region39: #{gpt_forward.9} parent=35 // pred_region
          %330 = vsyncadd %s322, 0
          %s331 = sadd.s32 %s25, %s24
          %s332 = sadd.s32 %s331, %s23
          %s333 = smul.addr %s332, 8
          %s334 = scalar_lea.hbm %s4, %s333
          %s336 = sshll.u32 %s325, 4
          %s337 = int_to_ptr.vmem [resolvable:$true] %s336
          %s338 = sshll.u32 %s334, 4
          %s339 = int_to_ptr.hbm [resolvable:$true] %s338
          %341 = dma.vmem_to_hbm [thread:$0]  %s337, 128, %s339, %s322
        $region40: #{gpt_forward.9} parent=35 // pred_fallthru
          _
      $region36: #{gpt_forward.9} parent=5 // pred_fallthru
        _
      %p342 = scmp.le.s32.totalorder 2, %s13
      // Predicated region
      $region41: #{gpt_forward.9} parent=5 // pred_check
        %p343 = pneg %p342
      $region42: #{gpt_forward.9} parent=5 // pred_check_branch
        %345 = sbr.rel (%p343) target = $region44
      $region43: #{gpt_forward.9} parent=5 // pred_region
        %s346 = ssub.s32 %s13, 2
        // Predicated region
        $region45: #{gpt_forward.9} parent=43 // pred_check
          %p347 = pneg %p161
        $region46: #{gpt_forward.9} parent=43 // pred_check_branch
          %349 = sbr.rel (%p347) target = $region48
        $region47: #{gpt_forward.9} parent=43 // pred_region
          %s350 = sand.u32 %s146, 1
          %s351 = scalar_lea.sflag [#allocation3], %s350
          %s352 = sand.u32 %s146, 1
          %s353 = smul.addr %s352, 8
          %s354 = scalar_lea.vmem [#allocation2], %s353
          %356 = dma.done %s351, 128
        $region48: #{gpt_forward.9} parent=43 // pred_fallthru
          _
      $region44: #{gpt_forward.9} parent=5 // pred_fallthru
        _
    $region6: #{gpt_forward.9} parent=1 // loop_footer
      %s17 = sadd.s32 1, %s13
    $region7: #{gpt_forward.9} parent=1 // loop_footer_branch
      %12 = sbr.rel target = $region3
    $region8: #{gpt_forward.9} parent=1 // loop_exit
      _
    %357 = vsyncpa [#allocation3], 1
    %s358 = scalar_lea.sflag [#allocation3], 1
    %359 = vsyncpa %s358, 1

// kernel: gpt_forward.6
$region0: #{gpt_forward.6}
  #allocation0 [shape = 'u32[]', space=smem, size = 0x4, offset = 0x4, fixed_abs, tag = 'smem constant byte address 0x4 - core index']
  #allocation1 [shape = 'u32[72,128]{1,0:T(1,128)}', space=vmem, size = 0x9000, scoped, tag = 'internal scratch']
  #allocation2 [shape = 'f32[4,8,1]{2,1,0:T(8,128)}', space=vmem, size = 0x4000, scoped, tag = 'scratch operand']
  #allocation3 [shape = 'f32[4,8,1]{2,1,0:T(8,128)}', space=vmem, size = 0x4000, scoped, tag = 'scratch operand']
  #allocation4 [shape = 'f32[4,8,8]{2,1,0:T(8,128)}', space=vmem, size = 0x4000, scoped, tag = 'scratch operand']
  %s0 = inlined_call_operand.vmem [shape: f32[2,8,32], index: 0, kind: input, shape index: {}]
  %s1 = inlined_call_operand.vmem [shape: bf16[2,4,8,8], index: 1, kind: input, shape index: {}]
  %s2 = inlined_call_operand.vmem [shape: bf16[2,4,8,8], index: 2, kind: input, shape index: {}]
  %s3 = inlined_call_operand.vmem [shape: bf16[2,4,8,8], index: 3, kind: input, shape index: {}]
  %s4 = inlined_call_operand.vmem [shape: bf16[4,8,32], index: 4, kind: input, shape index: {}]
  %s5 = inlined_call_operand.vmem [shape: f32[1,32], index: 5, kind: input, shape index: {}]
  %s6 = inlined_call_operand.vmem [shape: f32[1,32], index: 6, kind: input, shape index: {}]
  %s7 = inlined_call_operand.vmem [shape: f32[1,32], index: 7, kind: input, shape index: {}]
  %s8 = inlined_call_operand.vmem [shape: bf16[32,128], index: 8, kind: input, shape index: {}]
  %s9 = inlined_call_operand.vmem [shape: f32[1,128], index: 9, kind: input, shape index: {}]
  %s10 = inlined_call_operand.vmem [shape: bf16[128,32], index: 10, kind: input, shape index: {}]
  %s11 = inlined_call_operand.vmem [shape: f32[1,32], index: 11, kind: input, shape index: {}]
  %s12 = inlined_call_operand.vmem [shape: f32[2,8,32], index: 12, kind: output, shape index: {}]
  %s13 = sld [smem:[#allocation0]]
  $region93: #{gpt_forward.6} parent=0
    _
  %s15 = ssub.s32 1, %s13
  %s16 = scalar_select 0, %s15, %s13
  loop: start=0, step=1, limit=4
  $region2: #{gpt_forward.6} parent=0 // loop_pre_header
    _
  $region3: #{gpt_forward.6} parent=0 // loop_header
    %s18 = sphi 0, %s22
    %p19 = scmp.ge.s32.totalorder %s18, 4
    %s25 = sphi 0, %s44
    %s26 = sphi 0, %s40
    %s27 = sphi 0, %s36
    %s28 = sphi 0, %s25
    %s29 = sphi 0, %s26
    %s30 = sphi 0, %s27
    %s31 = sphi 0, %s28
    %s32 = sphi 0, %s29
    %s33 = sphi 0, %s30
    %s49 = sphi 0, %s51
    %s52 = sphi 0, %s49
    %s53 = sphi 0, %s52
    %s69 = sphi 0, %s53
    %s77 = sphi 0, %s79
    %s80 = sphi 0, %s77
    %s81 = sphi 0, %s80
    %s97 = sphi 0, %s81
    %s105 = sphi 0, %s107
    %s108 = sphi 0, %s105
    %s109 = sphi 0, %s108
    %s125 = sphi 0, %s109
    %s133 = sphi 0, %s135
    %s136 = sphi 0, %s133
    %s137 = sphi 0, %s136
    %s153 = sphi 0, %s137
    %s157 = sphi 0, %s157
    %s159 = sphi 0, %s157
    %s160 = sphi 0, %s159
    %s174 = sphi 0, %s160
    %s178 = sphi 0, %s178
    %s180 = sphi 0, %s178
    %s181 = sphi 0, %s180
    %s195 = sphi 0, %s181
    %s199 = sphi 0, %s199
    %s201 = sphi 0, %s199
    %s202 = sphi 0, %s201
    %s216 = sphi 0, %s202
    %s220 = sphi 0, %s220
    %s222 = sphi 0, %s220
    %s223 = sphi 0, %s222
    %s237 = sphi 0, %s223
    %s241 = sphi 0, %s241
    %s243 = sphi 0, %s241
    %s244 = sphi 0, %s243
    %s258 = sphi 0, %s244
    %s262 = sphi 0, %s262
    %s264 = sphi 0, %s262
    %s265 = sphi 0, %s264
    %s279 = sphi 0, %s265
    %s283 = sphi 0, %s283
    %s285 = sphi 0, %s283
    %s286 = sphi 0, %s285
    %s300 = sphi 0, %s286
    %s304 = sphi 0, %s304
    %s306 = sphi 0, %s304
    %s307 = sphi 0, %s306
    %s321 = sphi 0, %s307
    %s329 = sphi 0, %s331
    %s332 = sphi 0, %s329
    %s333 = sphi 0, %s332
    %s349 = sphi 0, %s333
  $region4: #{gpt_forward.6} parent=0 // loop_header_branch
    %21 = sbr.rel (%p19) target = $region8
  $region5: #{gpt_forward.6} parent=0 // loop_body
    %s23 = ssub.s32 %s18, 1
    %s24 = ssub.s32 %s18, 2
    %s34 = sadd.s32 1, %s27
    %p35 = scmp.ge.s32.totalorder %s34, 1
    %s36 = scalar_select %p35, 0, %s34
    %s37 = sadd.s32 1, %s26
    %s38 = scalar_select %p35, %s37, %s26
    %p39 = scmp.ge.s32.totalorder %s38, 1
    %s40 = scalar_select %p39, 0, %s38
    %s41 = sadd.s32 1, %s25
    %s42 = scalar_select %p39, %s41, %s25
    %p43 = scmp.ge.s32.totalorder %s42, 2
    %s44 = scalar_select %p43, 0, %s42
    %s45 = ssub.s32 %s25, %s44
    %s46 = ssub.s32 %s26, %s40
    %s47 = sor.u32 %s45, %s46
    %p48 = scmp.eq.s32.totalorder %s47, 0
    %s50 = sadd.s32 %s49, 1
    %s51 = scalar_select %p48, %s49, %s50
    %p54 = pneg %p48
    %p55 = scmp.eq.s32.totalorder %s18, 1
    %p56 = por %p54, %p55
    %p57 = scmp.ne.s32.totalorder %s49, %s52
    %p58 = scmp.eq.s32.totalorder %s18, 0
    %p59 = por %p57, %p58
    %p60 = scmp.ne.s32.totalorder %s49, %s52
    %p61 = scmp.eq.s32.totalorder %s23, 1
    %p62 = por %p60, %p61
    %p63 = scmp.ne.s32.totalorder %s52, %s53
    %p64 = scmp.eq.s32.totalorder %s23, 0
    %p65 = por %p63, %p64
    %p66 = scmp.ne.s32.totalorder %s52, %s53
    %p67 = scmp.eq.s32.totalorder %s24, 1
    %p68 = por %p66, %p67
    %p70 = scmp.ne.s32.totalorder %s53, %s69
    %p71 = scmp.eq.s32.totalorder %s24, 0
    %p72 = por %p70, %p71
    %s73 = ssub.s32 %s25, %s44
    %s74 = ssub.s32 %s26, %s40
    %s75 = sor.u32 %s73, %s74
    %p76 = scmp.eq.s32.totalorder %s75, 0
    %s78 = sadd.s32 %s77, 1
    %s79 = scalar_select %p76, %s77, %s78
    %p82 = pneg %p76
    %p83 = scmp.eq.s32.totalorder %s18, 1
    %p84 = por %p82, %p83
    %p85 = scmp.ne.s32.totalorder %s77, %s80
    %p86 = scmp.eq.s32.totalorder %s18, 0
    %p87 = por %p85, %p86
    %p88 = scmp.ne.s32.totalorder %s77, %s80
    %p89 = scmp.eq.s32.totalorder %s23, 1
    %p90 = por %p88, %p89
    %p91 = scmp.ne.s32.totalorder %s80, %s81
    %p92 = scmp.eq.s32.totalorder %s23, 0
    %p93 = por %p91, %p92
    %p94 = scmp.ne.s32.totalorder %s80, %s81
    %p95 = scmp.eq.s32.totalorder %s24, 1
    %p96 = por %p94, %p95
    %p98 = scmp.ne.s32.totalorder %s81, %s97
    %p99 = scmp.eq.s32.totalorder %s24, 0
    %p100 = por %p98, %p99
    %s101 = ssub.s32 %s25, %s44
    %s102 = ssub.s32 %s27, %s36
    %s103 = sor.u32 %s101, %s102
    %p104 = scmp.eq.s32.totalorder %s103, 0
    %s106 = sadd.s32 %s105, 1
    %s107 = scalar_select %p104, %s105, %s106
    %p110 = pneg %p104
    %p111 = scmp.eq.s32.totalorder %s18, 1
    %p112 = por %p110, %p111
    %p113 = scmp.ne.s32.totalorder %s105, %s108
    %p114 = scmp.eq.s32.totalorder %s18, 0
    %p115 = por %p113, %p114
    %p116 = scmp.ne.s32.totalorder %s105, %s108
    %p117 = scmp.eq.s32.totalorder %s23, 1
    %p118 = por %p116, %p117
    %p119 = scmp.ne.s32.totalorder %s108, %s109
    %p120 = scmp.eq.s32.totalorder %s23, 0
    %p121 = por %p119, %p120
    %p122 = scmp.ne.s32.totalorder %s108, %s109
    %p123 = scmp.eq.s32.totalorder %s24, 1
    %p124 = por %p122, %p123
    %p126 = scmp.ne.s32.totalorder %s109, %s125
    %p127 = scmp.eq.s32.totalorder %s24, 0
    %p128 = por %p126, %p127
    %s129 = ssub.s32 %s25, %s44
    %s130 = ssub.s32 %s27, %s36
    %s131 = sor.u32 %s129, %s130
    %p132 = scmp.eq.s32.totalorder %s131, 0
    %s134 = sadd.s32 %s133, 1
    %s135 = scalar_select %p132, %s133, %s134
    %p138 = pneg %p132
    %p139 = scmp.eq.s32.totalorder %s18, 1
    %p140 = por %p138, %p139
    %p141 = scmp.ne.s32.totalorder %s133, %s136
    %p142 = scmp.eq.s32.totalorder %s18, 0
    %p143 = por %p141, %p142
    %p144 = scmp.ne.s32.totalorder %s133, %s136
    %p145 = scmp.eq.s32.totalorder %s23, 1
    %p146 = por %p144, %p145
    %p147 = scmp.ne.s32.totalorder %s136, %s137
    %p148 = scmp.eq.s32.totalorder %s23, 0
    %p149 = por %p147, %p148
    %p150 = scmp.ne.s32.totalorder %s136, %s137
    %p151 = scmp.eq.s32.totalorder %s24, 1
    %p152 = por %p150, %p151
    %p154 = scmp.ne.s32.totalorder %s137, %s153
    %p155 = scmp.eq.s32.totalorder %s24, 0
    %p156 = por %p154, %p155
    %s158 = sadd.s32 %s157, 1
    %p161 = scmp.eq.s32.totalorder %s18, 1
    %p162 = scmp.ne.s32.totalorder %s157, %s159
    %p163 = scmp.eq.s32.totalorder %s18, 0
    %p164 = por %p162, %p163
    %p165 = scmp.ne.s32.totalorder %s157, %s159
    %p166 = scmp.eq.s32.totalorder %s23, 1
    %p167 = por %p165, %p166
    %p168 = scmp.ne.s32.totalorder %s159, %s160
    %p169 = scmp.eq.s32.totalorder %s23, 0
    %p170 = por %p168, %p169
    %p171 = scmp.ne.s32.totalorder %s159, %s160
    %p172 = scmp.eq.s32.totalorder %s24, 1
    %p173 = por %p171, %p172
    %p175 = scmp.ne.s32.totalorder %s160, %s174
    %p176 = scmp.eq.s32.totalorder %s24, 0
    %p177 = por %p175, %p176
    %s179 = sadd.s32 %s178, 1
    %p182 = scmp.eq.s32.totalorder %s18, 1
    %p183 = scmp.ne.s32.totalorder %s178, %s180
    %p184 = scmp.eq.s32.totalorder %s18, 0
    %p185 = por %p183, %p184
    %p186 = scmp.ne.s32.totalorder %s178, %s180
    %p187 = scmp.eq.s32.totalorder %s23, 1
    %p188 = por %p186, %p187
    %p189 = scmp.ne.s32.totalorder %s180, %s181
    %p190 = scmp.eq.s32.totalorder %s23, 0
    %p191 = por %p189, %p190
    %p192 = scmp.ne.s32.totalorder %s180, %s181
    %p193 = scmp.eq.s32.totalorder %s24, 1
    %p194 = por %p192, %p193
    %p196 = scmp.ne.s32.totalorder %s181, %s195
    %p197 = scmp.eq.s32.totalorder %s24, 0
    %p198 = por %p196, %p197
    %s200 = sadd.s32 %s199, 1
    %p203 = scmp.eq.s32.totalorder %s18, 1
    %p204 = scmp.ne.s32.totalorder %s199, %s201
    %p205 = scmp.eq.s32.totalorder %s18, 0
    %p206 = por %p204, %p205
    %p207 = scmp.ne.s32.totalorder %s199, %s201
    %p208 = scmp.eq.s32.totalorder %s23, 1
    %p209 = por %p207, %p208
    %p210 = scmp.ne.s32.totalorder %s201, %s202
    %p211 = scmp.eq.s32.totalorder %s23, 0
    %p212 = por %p210, %p211
    %p213 = scmp.ne.s32.totalorder %s201, %s202
    %p214 = scmp.eq.s32.totalorder %s24, 1
    %p215 = por %p213, %p214
    %p217 = scmp.ne.s32.totalorder %s202, %s216
    %p218 = scmp.eq.s32.totalorder %s24, 0
    %p219 = por %p217, %p218
    %s221 = sadd.s32 %s220, 1
    %p224 = scmp.eq.s32.totalorder %s18, 1
    %p225 = scmp.ne.s32.totalorder %s220, %s222
    %p226 = scmp.eq.s32.totalorder %s18, 0
    %p227 = por %p225, %p226
    %p228 = scmp.ne.s32.totalorder %s220, %s222
    %p229 = scmp.eq.s32.totalorder %s23, 1
    %p230 = por %p228, %p229
    %p231 = scmp.ne.s32.totalorder %s222, %s223
    %p232 = scmp.eq.s32.totalorder %s23, 0
    %p233 = por %p231, %p232
    %p234 = scmp.ne.s32.totalorder %s222, %s223
    %p235 = scmp.eq.s32.totalorder %s24, 1
    %p236 = por %p234, %p235
    %p238 = scmp.ne.s32.totalorder %s223, %s237
    %p239 = scmp.eq.s32.totalorder %s24, 0
    %p240 = por %p238, %p239
    %s242 = sadd.s32 %s241, 1
    %p245 = scmp.eq.s32.totalorder %s18, 1
    %p246 = scmp.ne.s32.totalorder %s241, %s243
    %p247 = scmp.eq.s32.totalorder %s18, 0
    %p248 = por %p246, %p247
    %p249 = scmp.ne.s32.totalorder %s241, %s243
    %p250 = scmp.eq.s32.totalorder %s23, 1
    %p251 = por %p249, %p250
    %p252 = scmp.ne.s32.totalorder %s243, %s244
    %p253 = scmp.eq.s32.totalorder %s23, 0
    %p254 = por %p252, %p253
    %p255 = scmp.ne.s32.totalorder %s243, %s244
    %p256 = scmp.eq.s32.totalorder %s24, 1
    %p257 = por %p255, %p256
    %p259 = scmp.ne.s32.totalorder %s244, %s258
    %p260 = scmp.eq.s32.totalorder %s24, 0
    %p261 = por %p259, %p260
    %s263 = sadd.s32 %s262, 1
    %p266 = scmp.eq.s32.totalorder %s18, 1
    %p267 = scmp.ne.s32.totalorder %s262, %s264
    %p268 = scmp.eq.s32.totalorder %s18, 0
    %p269 = por %p267, %p268
    %p270 = scmp.ne.s32.totalorder %s262, %s264
    %p271 = scmp.eq.s32.totalorder %s23, 1
    %p272 = por %p270, %p271
    %p273 = scmp.ne.s32.totalorder %s264, %s265
    %p274 = scmp.eq.s32.totalorder %s23, 0
    %p275 = por %p273, %p274
    %p276 = scmp.ne.s32.totalorder %s264, %s265
    %p277 = scmp.eq.s32.totalorder %s24, 1
    %p278 = por %p276, %p277
    %p280 = scmp.ne.s32.totalorder %s265, %s279
    %p281 = scmp.eq.s32.totalorder %s24, 0
    %p282 = por %p280, %p281
    %s284 = sadd.s32 %s283, 1
    %p287 = scmp.eq.s32.totalorder %s18, 1
    %p288 = scmp.ne.s32.totalorder %s283, %s285
    %p289 = scmp.eq.s32.totalorder %s18, 0
    %p290 = por %p288, %p289
    %p291 = scmp.ne.s32.totalorder %s283, %s285
    %p292 = scmp.eq.s32.totalorder %s23, 1
    %p293 = por %p291, %p292
    %p294 = scmp.ne.s32.totalorder %s285, %s286
    %p295 = scmp.eq.s32.totalorder %s23, 0
    %p296 = por %p294, %p295
    %p297 = scmp.ne.s32.totalorder %s285, %s286
    %p298 = scmp.eq.s32.totalorder %s24, 1
    %p299 = por %p297, %p298
    %p301 = scmp.ne.s32.totalorder %s286, %s300
    %p302 = scmp.eq.s32.totalorder %s24, 0
    %p303 = por %p301, %p302
    %s305 = sadd.s32 %s304, 1
    %p308 = scmp.eq.s32.totalorder %s18, 1
    %p309 = scmp.ne.s32.totalorder %s304, %s306
    %p310 = scmp.eq.s32.totalorder %s18, 0
    %p311 = por %p309, %p310
    %p312 = scmp.ne.s32.totalorder %s304, %s306
    %p313 = scmp.eq.s32.totalorder %s23, 1
    %p314 = por %p312, %p313
    %p315 = scmp.ne.s32.totalorder %s306, %s307
    %p316 = scmp.eq.s32.totalorder %s23, 0
    %p317 = por %p315, %p316
    %p318 = scmp.ne.s32.totalorder %s306, %s307
    %p319 = scmp.eq.s32.totalorder %s24, 1
    %p320 = por %p318, %p319
    %p322 = scmp.ne.s32.totalorder %s307, %s321
    %p323 = scmp.eq.s32.totalorder %s24, 0
    %p324 = por %p322, %p323
    %s325 = ssub.s32 %s25, %s44
    %s326 = ssub.s32 %s26, %s40
    %s327 = sor.u32 %s325, %s326
    %p328 = scmp.eq.s32.totalorder %s327, 0
    %s330 = sadd.s32 %s329, 1
    %s331 = scalar_select %p328, %s329, %s330
    %p334 = pneg %p328
    %p335 = scmp.eq.s32.totalorder %s18, 1
    %p336 = por %p334, %p335
    %p337 = scmp.ne.s32.totalorder %s329, %s332
    %p338 = scmp.eq.s32.totalorder %s18, 0
    %p339 = por %p337, %p338
    %p340 = scmp.ne.s32.totalorder %s329, %s332
    %p341 = scmp.eq.s32.totalorder %s23, 1
    %p342 = por %p340, %p341
    %p343 = scmp.ne.s32.totalorder %s332, %s333
    %p344 = scmp.eq.s32.totalorder %s23, 0
    %p345 = por %p343, %p344
    %p346 = scmp.ne.s32.totalorder %s332, %s333
    %p347 = scmp.eq.s32.totalorder %s24, 1
    %p348 = por %p346, %p347
    %p350 = scmp.ne.s32.totalorder %s333, %s349
    %p351 = scmp.eq.s32.totalorder %s24, 0
    %p352 = por %p350, %p351
    %p353 = scmp.le.s32.totalorder 1, %s18
    %p354 = scmp.lt.s32.totalorder %s18, 3
    %p355 = pnand %p353, %p354
    %p356 = pneg %p355
    // Predicated region
    $region9: #{gpt_forward.6} parent=5 // pred_check
      _
    $region10: #{gpt_forward.6} parent=5 // pred_check_branch
      %358 = sbr.rel (%p355) target = $region12
    $region11: #{gpt_forward.6} parent=5 // pred_region
      %s359 = ssub.s32 %s18, 1
      // Predicated region
      $region13: #{gpt_forward.6} parent=11 // pred_check
        %p360 = pneg %p170
      $region14: #{gpt_forward.6} parent=11 // pred_check_branch
        %362 = sbr.rel (%p360) target = $region16
      $region15: #{gpt_forward.6} parent=11 // pred_region
        _
      $region16: #{gpt_forward.6} parent=11 // pred_fallthru
        _
      // Predicated region
      $region17: #{gpt_forward.6} parent=11 // pred_check
        %p363 = pneg %p191
      $region18: #{gpt_forward.6} parent=11 // pred_check_branch
        %365 = sbr.rel (%p363) target = $region20
      $region19: #{gpt_forward.6} parent=11 // pred_region
        _
      $region20: #{gpt_forward.6} parent=11 // pred_fallthru
        _
      // Predicated region
      $region21: #{gpt_forward.6} parent=11 // pred_check
        %p366 = pneg %p212
      $region22: #{gpt_forward.6} parent=11 // pred_check_branch
        %368 = sbr.rel (%p366) target = $region24
      $region23: #{gpt_forward.6} parent=11 // pred_region
        _
      $region24: #{gpt_forward.6} parent=11 // pred_fallthru
        _
      // Predicated region
      $region25: #{gpt_forward.6} parent=11 // pred_check
        %p369 = pneg %p233
      $region26: #{gpt_forward.6} parent=11 // pred_check_branch
        %371 = sbr.rel (%p369) target = $region28
      $region27: #{gpt_forward.6} parent=11 // pred_region
        _
      $region28: #{gpt_forward.6} parent=11 // pred_fallthru
        _
      // Predicated region
      $region29: #{gpt_forward.6} parent=11 // pred_check
        %p372 = pneg %p254
      $region30: #{gpt_forward.6} parent=11 // pred_check_branch
        %374 = sbr.rel (%p372) target = $region32
      $region31: #{gpt_forward.6} parent=11 // pred_region
        _
      $region32: #{gpt_forward.6} parent=11 // pred_fallthru
        _
      // Predicated region
      $region33: #{gpt_forward.6} parent=11 // pred_check
        %p375 = pneg %p275
      $region34: #{gpt_forward.6} parent=11 // pred_check_branch
        %377 = sbr.rel (%p375) target = $region36
      $region35: #{gpt_forward.6} parent=11 // pred_region
        _
      $region36: #{gpt_forward.6} parent=11 // pred_fallthru
        _
      // Predicated region
      $region37: #{gpt_forward.6} parent=11 // pred_check
        %p378 = pneg %p296
      $region38: #{gpt_forward.6} parent=11 // pred_check_branch
        %380 = sbr.rel (%p378) target = $region40
      $region39: #{gpt_forward.6} parent=11 // pred_region
        _
      $region40: #{gpt_forward.6} parent=11 // pred_fallthru
        _
      // Predicated region
      $region41: #{gpt_forward.6} parent=11 // pred_check
        %p381 = pneg %p317
      $region42: #{gpt_forward.6} parent=11 // pred_check_branch
        %383 = sbr.rel (%p381) target = $region44
      $region43: #{gpt_forward.6} parent=11 // pred_region
        _
      $region44: #{gpt_forward.6} parent=11 // pred_fallthru
        _
    $region12: #{gpt_forward.6} parent=5 // pred_fallthru
      _
    %p384 = scmp.lt.s32.totalorder %s18, 2
    // Predicated region
    $region45: #{gpt_forward.6} parent=5 // pred_check
      %p385 = pneg %p384
    $region46: #{gpt_forward.6} parent=5 // pred_check_branch
      %387 = sbr.rel (%p385) target = $region48
    $region47: #{gpt_forward.6} parent=5 // pred_region
      // Predicated region
      $region49: #{gpt_forward.6} parent=47 // pred_check
        %p388 = pneg %p59
      $region50: #{gpt_forward.6} parent=47 // pred_check_branch
        %390 = sbr.rel (%p388) target = $region52
      $region51: #{gpt_forward.6} parent=47 // pred_region
        %p391 = scmp.lt.s32.totalorder %s25, 1
        %s392 = scalar_select %p391, %s25, 1
        %p393 = scmp.lt.s32.totalorder %s26, 0
        %s394 = scalar_select %p393, %s26, 0
        %s395 = sadd.s32 %s394, %s392
        %s396 = smul.addr %s395, 8
        %s397 = scalar_lea.vmem %s0, %s396
      $region52: #{gpt_forward.6} parent=47 // pred_fallthru
        _
      // Predicated region
      $region53: #{gpt_forward.6} parent=47 // pred_check
        %p398 = pneg %p87
      $region54: #{gpt_forward.6} parent=47 // pred_check_branch
        %400 = sbr.rel (%p398) target = $region56
      $region55: #{gpt_forward.6} parent=47 // pred_region
        %p401 = scmp.lt.s32.totalorder %s25, 1
        %s402 = scalar_select %p401, %s25, 1
        %p403 = scmp.lt.s32.totalorder %s26, 0
        %s404 = scalar_select %p403, %s26, 0
        %s405 = smul.addr %s402, 4
        %s406 = sadd.s32 %s404, %s405
        %s407 = smul.addr %s406, 4
        %s408 = scalar_lea.vmem %s1, %s407
      $region56: #{gpt_forward.6} parent=47 // pred_fallthru
        _
      // Predicated region
      $region57: #{gpt_forward.6} parent=47 // pred_check
        %p409 = pneg %p115
      $region58: #{gpt_forward.6} parent=47 // pred_check_branch
        %411 = sbr.rel (%p409) target = $region60
      $region59: #{gpt_forward.6} parent=47 // pred_region
        %p412 = scmp.lt.s32.totalorder %s25, 1
        %s413 = scalar_select %p412, %s25, 1
        %p414 = scmp.lt.s32.totalorder %s27, 0
        %s415 = scalar_select %p414, %s27, 0
        %s416 = smul.addr %s413, 4
        %s417 = sadd.s32 %s415, %s416
        %s418 = smul.addr %s417, 4
        %s419 = scalar_lea.vmem %s2, %s418
      $region60: #{gpt_forward.6} parent=47 // pred_fallthru
        _
      // Predicated region
      $region61: #{gpt_forward.6} parent=47 // pred_check
        %p420 = pneg %p143
      $region62: #{gpt_forward.6} parent=47 // pred_check_branch
        %422 = sbr.rel (%p420) target = $region64
      $region63: #{gpt_forward.6} parent=47 // pred_region
        %p423 = scmp.lt.s32.totalorder %s25, 1
        %s424 = scalar_select %p423, %s25, 1
        %p425 = scmp.lt.s32.totalorder %s27, 0
        %s426 = scalar_select %p425, %s27, 0
        %s427 = smul.addr %s424, 4
        %s428 = sadd.s32 %s426, %s427
        %s429 = smul.addr %s428, 4
        %s430 = scalar_lea.vmem %s3, %s429
      $region64: #{gpt_forward.6} parent=47 // pred_fallthru
        _
    $region48: #{gpt_forward.6} parent=5 // pred_fallthru
      _
    %p431 = scmp.le.s32.totalorder 1, %s18
    %p432 = scmp.lt.s32.totalorder %s18, 3
    %p433 = pnand %p431, %p432
    %p434 = pneg %p433
    // Predicated region
    $region65: #{gpt_forward.6} parent=5 // pred_check
      _
    $region66: #{gpt_forward.6} parent=5 // pred_check_branch
      %436 = sbr.rel (%p433) target = $region68
    $region67: #{gpt_forward.6} parent=5 // pred_region
      %s437 = ssub.s32 %s18, 1
      %p438 = scmp.lt.s32.totalorder %s28, 1
      %s439 = scalar_select %p438, %s28, 1
      %p440 = scmp.lt.s32.totalorder %s29, 0
      %s441 = scalar_select %p440, %s29, 0
      %s442 = sadd.s32 %s441, %s439
      %s443 = smul.addr %s442, 8
      %s444 = scalar_lea.vmem %s0, %s443
      %p445 = pneg %p65
      %p446 = pneg %p62
      %p447 = scmp.lt.s32.totalorder %s28, 1
      %s448 = scalar_select %p447, %s28, 1
      %p449 = scmp.lt.s32.totalorder %s29, 0
      %s450 = scalar_select %p449, %s29, 0
      %s451 = smul.addr %s448, 4
      %s452 = sadd.s32 %s450, %s451
      %s453 = smul.addr %s452, 4
      %s454 = scalar_lea.vmem %s1, %s453
      %p455 = pneg %p93
      %p456 = pneg %p90
      %p457 = scmp.lt.s32.totalorder %s28, 1
      %s458 = scalar_select %p457, %s28, 1
      %p459 = scmp.lt.s32.totalorder %s30, 0
      %s460 = scalar_select %p459, %s30, 0
      %s461 = smul.addr %s458, 4
      %s462 = sadd.s32 %s460, %s461
      %s463 = smul.addr %s462, 4
      %s464 = scalar_lea.vmem %s2, %s463
      %p465 = pneg %p121
      %p466 = pneg %p118
      %p467 = scmp.lt.s32.totalorder %s28, 1
      %s468 = scalar_select %p467, %s28, 1
      %p469 = scmp.lt.s32.totalorder %s30, 0
      %s470 = scalar_select %p469, %s30, 0
      %s471 = smul.addr %s468, 4
      %s472 = sadd.s32 %s470, %s471
      %s473 = smul.addr %s472, 4
      %s474 = scalar_lea.vmem %s3, %s473
      %p475 = pneg %p149
      %p476 = pneg %p146
      %p477 = pneg %p170
      %p478 = pneg %p167
      %p479 = pneg %p191
      %p480 = pneg %p188
      %p481 = pneg %p212
      %p482 = pneg %p209
      %p483 = pneg %p233
      %p484 = pneg %p230
      %p485 = pneg %p254
      %p486 = pneg %p251
      %p487 = pneg %p275
      %p488 = pneg %p272
      %p489 = pneg %p296
      %p490 = pneg %p293
      %p491 = pneg %p317
      %p492 = pneg %p314
      %p493 = pneg %p345
      %p494 = pneg %p342
      %p495 = scmp.lt.s32.totalorder %s28, 1
      %s496 = scalar_select %p495, %s28, 1
      %p497 = scmp.lt.s32.totalorder %s29, 0
      %s498 = scalar_select %p497, %s29, 0
      %s499 = sadd.s32 %s498, %s496
      %s500 = smul.addr %s499, 8
      %s501 = scalar_lea.vmem %s12, %s500
      %p502 = scmp.lt.s32.totalorder %s28, 1
      %s503 = scalar_select %p502, %s28, 1
      %p504 = scmp.lt.s32.totalorder %s29, 0
      %s505 = scalar_select %p504, %s29, 0
      %s506 = sadd.s32 %s505, %s503
      %s507 = smul.addr %s506, 8
      %s508 = scalar_lea.vmem %s0, %s507
      %p509 = scmp.lt.s32.totalorder %s28, 1
      %s510 = scalar_select %p509, %s28, 1
      %p511 = scmp.lt.s32.totalorder %s29, 0
      %s512 = scalar_select %p511, %s29, 0
      %s513 = smul.addr %s510, 4
      %s514 = sadd.s32 %s512, %s513
      %s515 = smul.addr %s514, 4
      %s516 = scalar_lea.vmem %s1, %s515
      %p517 = scmp.lt.s32.totalorder %s28, 1
      %s518 = scalar_select %p517, %s28, 1
      %p519 = scmp.lt.s32.totalorder %s30, 0
      %s520 = scalar_select %p519, %s30, 0
      %s521 = smul.addr %s518, 4
      %s522 = sadd.s32 %s520, %s521
      %s523 = smul.addr %s522, 4
      %s524 = scalar_lea.vmem %s2, %s523
      %p525 = scmp.lt.s32.totalorder %s28, 1
      %s526 = scalar_select %p525, %s28, 1
      %p527 = scmp.lt.s32.totalorder %s30, 0
      %s528 = scalar_select %p527, %s30, 0
      %s529 = smul.addr %s526, 4
      %s530 = sadd.s32 %s528, %s529
      %s531 = smul.addr %s530, 4
      %s532 = scalar_lea.vmem %s3, %s531
      %p533 = scmp.lt.s32.totalorder %s28, 1
      %s534 = scalar_select %p533, %s28, 1
      %p535 = scmp.lt.s32.totalorder %s29, 0
      %s536 = scalar_select %p535, %s29, 0
      %s537 = sadd.s32 %s536, %s534
      %s538 = smul.addr %s537, 8
      %s539 = scalar_lea.vmem %s12, %s538
      %p541 = scmp.eq.s32.totalorder %s30, 0
      // Predicated region
      $region69: #{gpt_forward.6} parent=67 // pred_check
        %p542 = pneg %p541
      $region70: #{gpt_forward.6} parent=67 // pred_check_branch
        %544 = sbr.rel (%p542) target = $region72
      $region71: #{gpt_forward.6} parent=67 // pred_region
        %vm545 = vcmask 7168
        %546 = vst.msk [vmem:[#allocation2] sm:$0xff] %vm545, -inf
        %547 = vst.msk [vmem:[#allocation2 + $0x8] sm:$0xff] %vm545, -inf
        %548 = vst.msk [vmem:[#allocation2 + $0x10] sm:$0xff] %vm545, -inf
        %549 = vst.msk [vmem:[#allocation2 + $0x18] sm:$0xff] %vm545, -inf
        %550 = vst.msk [vmem:[#allocation3] sm:$0xff] %vm545, 0.0
        %551 = vst.msk [vmem:[#allocation3 + $0x8] sm:$0xff] %vm545, 0.0
        %552 = vst.msk [vmem:[#allocation3 + $0x10] sm:$0xff] %vm545, 0.0
        %553 = vst.msk [vmem:[#allocation3 + $0x18] sm:$0xff] %vm545, 0.0
        %vm554 = vcmask 64512
        %555 = vst.msk [vmem:[#allocation4] sm:$0xff] %vm554, 0.0
        %556 = vst.msk [vmem:[#allocation4 + $0x8] sm:$0xff] %vm554, 0.0
        %557 = vst.msk [vmem:[#allocation4 + $0x10] sm:$0xff] %vm554, 0.0
        %558 = vst.msk [vmem:[#allocation4 + $0x18] sm:$0xff] %vm554, 0.0
      $region72: #{gpt_forward.6} parent=67 // pred_fallthru
        _
      %s559 = sadd.s32 %s29, 1
      %s560 = smul.u32 %s559, 8
      %s561 = ssub.s32 %s560, 1
      %s562 = smul.u32 %s30, 8
      %p563 = scmp.le.s32.totalorder %s562, %s561
      // Predicated region
      $region73: #{gpt_forward.6} parent=67 // pred_check
        %p564 = pneg %p563
      $region74: #{gpt_forward.6} parent=67 // pred_check_branch
        %566 = sbr.rel (%p564) target = $region76
      $region75: #{gpt_forward.6} parent=67 // pred_region
        %v567 = vld [vmem:[%s516] sm:$0xf]
        %v568 = vld [vmem:[%s516 + $0x4] sm:$0xf]
        %v569 = vld [vmem:[%s516 + $0x8] sm:$0xf]
        %v570 = vld [vmem:[%s516 + $0xc] sm:$0xf]
        %v571 = vld [vmem:[%s524] sm:$0xf]
        %v572 = vld [vmem:[%s524 + $0x4] sm:$0xf]
        %v573 = vld [vmem:[%s524 + $0x8] sm:$0xf]
        %v574 = vld [vmem:[%s524 + $0xc] sm:$0xf]
        %v575 = vld [vmem:[%s532] sm:$0xf]
        %v576 = vld [vmem:[%s532 + $0x4] sm:$0xf]
        %v577 = vld [vmem:[%s532 + $0x8] sm:$0xf]
        %v578 = vld [vmem:[%s532 + $0xc] sm:$0xf]
        %vm579 = vcmask 64512
        %v581 = vsel %vm579, %v567, 0
        %v584 = vsel %vm579, %v571, 0
        %586 = vmatpush.bf16.xpose.msra.mxu0 0
        %587 = vmatpush.bf16.xpose.msra.mxu0 0
        %588 = vmatpush.bf16.xpose.msra.mxu0 0
        %589 = vmatpush.bf16.xpose.msra.mxu0 0
        %590 = vmatpush.bf16.xpose.msra.mxu0 0
        %591 = vmatpush.bf16.xpose.msra.mxu0 0
        %592 = vmatpush.bf16.xpose.msra.mxu0 0
        %593 = vmatpush.bf16.xpose.msra.mxu0 %v584
        %594 = vmatmul.bf16.gmra.mxu0 %v581
        %v595 = vpop.f32.mrf.mxu0
        %v596 = vadd.f32 0.0, %v595
        %v597 = vpop.f32.mrf.mxu0
        %598 = vdwg.mxu0
        %v600 = vsel %vm579, %v568, 0
        %v603 = vsel %vm579, %v572, 0
        %605 = vmatpush.bf16.xpose.msra.mxu0 0
        %606 = vmatpush.bf16.xpose.msra.mxu0 0
        %607 = vmatpush.bf16.xpose.msra.mxu0 0
        %608 = vmatpush.bf16.xpose.msra.mxu0 0
        %609 = vmatpush.bf16.xpose.msra.mxu0 0
        %610 = vmatpush.bf16.xpose.msra.mxu0 0
        %611 = vmatpush.bf16.xpose.msra.mxu0 0
        %612 = vmatpush.bf16.xpose.msra.mxu0 %v603
        %613 = vmatmul.bf16.gmra.mxu0 %v600
        %v614 = vpop.f32.mrf.mxu0
        %v615 = vadd.f32 0.0, %v614
        %v616 = vpop.f32.mrf.mxu0
        %617 = vdwg.mxu0
        %v619 = vsel %vm579, %v569, 0
        %v622 = vsel %vm579, %v573, 0
        %624 = vmatpush.bf16.xpose.msra.mxu0 0
        %625 = vmatpush.bf16.xpose.msra.mxu0 0
        %626 = vmatpush.bf16.xpose.msra.mxu0 0
        %627 = vmatpush.bf16.xpose.msra.mxu0 0
        %628 = vmatpush.bf16.xpose.msra.mxu0 0
        %629 = vmatpush.bf16.xpose.msra.mxu0 0
        %630 = vmatpush.bf16.xpose.msra.mxu0 0
        %631 = vmatpush.bf16.xpose.msra.mxu0 %v622
        %632 = vmatmul.bf16.gmra.mxu0 %v619
        %v633 = vpop.f32.mrf.mxu0
        %v634 = vadd.f32 0.0, %v633
        %v635 = vpop.f32.mrf.mxu0
        %636 = vdwg.mxu0
        %v638 = vsel %vm579, %v570, 0
        %v641 = vsel %vm579, %v574, 0
        %643 = vmatpush.bf16.xpose.msra.mxu0 0
        %644 = vmatpush.bf16.xpose.msra.mxu0 0
        %645 = vmatpush.bf16.xpose.msra.mxu0 0
        %646 = vmatpush.bf16.xpose.msra.mxu0 0
        %647 = vmatpush.bf16.xpose.msra.mxu0 0
        %648 = vmatpush.bf16.xpose.msra.mxu0 0
        %649 = vmatpush.bf16.xpose.msra.mxu0 0
        %650 = vmatpush.bf16.xpose.msra.mxu0 %v641
        %651 = vmatmul.bf16.gmra.mxu0 %v638
        %v652 = vpop.f32.mrf.mxu0
        %v653 = vadd.f32 0.0, %v652
        %v654 = vpop.f32.mrf.mxu0
        %655 = vdwg.mxu0
        %s656 = smul.u32 %s29, 8
        %v657 = vlaneseq
        %v658 = vshrl.u32 %v657, 7
        %v659 = vstv %s656
        %v660 = vadd.s32 %v659, %v658
        %v661 = vlaneseq
        %v662 = vand.u32 %v661, 127
        %v663 = vstv %s562
        %v664 = vadd.s32 %v663, %v662
        %vm665 = vcmp.le.s32.totalorder %v664, %v660
        %v666 = vsel %vm665, 1, 0
        %vm667 = vcmp.eq.s32.totalorder %v666, 1
        %v668 = vsel %vm667, %v596, -inf
        %v669 = vsel %vm667, %v615, -inf
        %v670 = vsel %vm667, %v634, -inf
        %v671 = vsel %vm667, %v653, -inf
        %v672 = vld [vmem:[#allocation2] sm:$0xff]
        %v673 = vld [vmem:[#allocation2 + $0x8] sm:$0xff]
        %v674 = vld [vmem:[#allocation2 + $0x10] sm:$0xff]
        %v675 = vld [vmem:[#allocation2 + $0x18] sm:$0xff]
        %v676 = vsel %vm579, %v668, -inf
        %677 = vmax.xlane.f32.xlu0 %v676
        %v678 = vpop.xlane.xlu0 %677
        %v679 = vsel %vm579, %v669, -inf
        %680 = vmax.xlane.f32.xlu0 %v679
        %v681 = vpop.xlane.xlu0 %680
        %v682 = vsel %vm579, %v670, -inf
        %683 = vmax.xlane.f32.xlu0 %v682
        %v684 = vpop.xlane.xlu0 %683
        %v685 = vsel %vm579, %v671, -inf
        %686 = vmax.xlane.f32.xlu0 %v685
        %v687 = vpop.xlane.xlu0 %686
        %v688 = vmax.f32 %v672, %v678
        %v689 = vmax.f32 %v673, %v681
        %v690 = vmax.f32 %v674, %v684
        %v691 = vmax.f32 %v675, %v687
        %v692 = vsub.f32 %v672, %v688
        %v693 = vsub.f32 %v673, %v689
        %v694 = vsub.f32 %v674, %v690
        %v695 = vsub.f32 %v675, %v691
        %v696 = vmul.f32 %v692, 1.442695
        %v697 = vpow.pop %v696
        %v698 = vmul.f32 %v693, 1.442695
        %v699 = vpow.pop %v698
        %v700 = vmul.f32 %v694, 1.442695
        %v701 = vpow.pop %v700
        %v702 = vmul.f32 %v695, 1.442695
        %v703 = vpow.pop %v702
        %705 = vset.pattern.permute.xlu0 0
        %706 = vperm.xlu0 %705, %v688
        %v707 = vpop.permute.xlu0 %706
        %710 = vset.pattern.permute.xlu0 0
        %711 = vperm.xlu0 %710, %v689
        %v712 = vpop.permute.xlu0 %711
        %715 = vset.pattern.permute.xlu0 0
        %716 = vperm.xlu0 %715, %v690
        %v717 = vpop.permute.xlu0 %716
        %720 = vset.pattern.permute.xlu0 0
        %721 = vperm.xlu0 %720, %v691
        %v722 = vpop.permute.xlu0 %721
        %v724 = vsub.f32 %v668, %v707
        %v725 = vsub.f32 %v669, %v712
        %v726 = vsub.f32 %v670, %v717
        %v727 = vsub.f32 %v671, %v722
        %v728 = vmul.f32 %v724, 1.442695
        %v729 = vpow.pop %v728
        %v730 = vmul.f32 %v725, 1.442695
        %v731 = vpow.pop %v730
        %v732 = vmul.f32 %v726, 1.442695
        %v733 = vpow.pop %v732
        %v734 = vmul.f32 %v727, 1.442695
        %v735 = vpow.pop %v734
        %v736 = vld [vmem:[#allocation3] sm:$0xff]
        %v737 = vld [vmem:[#allocation3 + $0x8] sm:$0xff]
        %v738 = vld [vmem:[#allocation3 + $0x10] sm:$0xff]
        %v739 = vld [vmem:[#allocation3 + $0x18] sm:$0xff]
        %v740 = vmul.f32 %v697, %v736
        %v741 = vmul.f32 %v699, %v737
        %v742 = vmul.f32 %v701, %v738
        %v743 = vmul.f32 %v703, %v739
        %v744 = vsel %vm579, %v729, 0.0
        %745 = vadd.xlane.f32.xlu0 %v744
        %v746 = vpop.xlane.xlu0 %745
        %v747 = vsel %vm579, %v731, 0.0
        %748 = vadd.xlane.f32.xlu0 %v747
        %v749 = vpop.xlane.xlu0 %748
        %v750 = vsel %vm579, %v733, 0.0
        %751 = vadd.xlane.f32.xlu0 %v750
        %v752 = vpop.xlane.xlu0 %751
        %v753 = vsel %vm579, %v735, 0.0
        %754 = vadd.xlane.f32.xlu0 %v753
        %v755 = vpop.xlane.xlu0 %754
        %v756 = vadd.f32 %v740, %v746
        %v757 = vadd.f32 %v741, %v749
        %v758 = vadd.f32 %v742, %v752
        %v759 = vadd.f32 %v743, %v755
        %vm760 = vcmask 7168
        %761 = vst.msk [vmem:[#allocation3] sm:$0xff] %vm760, %v756
        %762 = vst.msk [vmem:[#allocation3 + $0x8] sm:$0xff] %vm760, %v757
        %763 = vst.msk [vmem:[#allocation3 + $0x10] sm:$0xff] %vm760, %v758
        %764 = vst.msk [vmem:[#allocation3 + $0x18] sm:$0xff] %vm760, %v759
        %v765 = vld [vmem:[#allocation4] sm:$0xff]
        %v766 = vld [vmem:[#allocation4 + $0x8] sm:$0xff]
        %v767 = vld [vmem:[#allocation4 + $0x10] sm:$0xff]
        %v768 = vld [vmem:[#allocation4 + $0x18] sm:$0xff]
        %770 = vset.pattern.permute.xlu0 0
        %771 = vperm.xlu0 %770, %v697
        %v772 = vpop.permute.xlu0 %771
        %775 = vset.pattern.permute.xlu0 0
        %776 = vperm.xlu0 %775, %v699
        %v777 = vpop.permute.xlu0 %776
        %780 = vset.pattern.permute.xlu0 0
        %781 = vperm.xlu0 %780, %v701
        %v782 = vpop.permute.xlu0 %781
        %785 = vset.pattern.permute.xlu0 0
        %786 = vperm.xlu0 %785, %v703
        %v787 = vpop.permute.xlu0 %786
        %v789 = vmul.f32 %v772, %v765
        %v790 = vmul.f32 %v777, %v766
        %v791 = vmul.f32 %v782, %v767
        %v792 = vmul.f32 %v787, %v768
        %v793 = vpack.c.bf16 %v729, %v729
        %v794 = vpack.c.bf16 %v731, %v731
        %v795 = vpack.c.bf16 %v733, %v733
        %v796 = vpack.c.bf16 %v735, %v735
        %v798 = vsel %vm579, %v793, 0
        %vm800 = vcmask 1043456
        %v802 = vsel %vm800, %v575, 0
        %804 = vmatpush.bf16.msra.mxu0 0
        %805 = vmatpush.bf16.msra.mxu0 0
        %806 = vmatpush.bf16.msra.mxu0 0
        %807 = vmatpush.bf16.msra.mxu0 0
        %808 = vmatpush.bf16.msra.mxu0 0
        %809 = vmatpush.bf16.msra.mxu0 0
        %810 = vmatpush.bf16.msra.mxu0 0
        %811 = vmatpush.bf16.msra.mxu0 %v802
        %812 = vmatmul.bf16.gmra.mxu0 %v798
        %v813 = vpop.f32.mrf.mxu0
        %v814 = vadd.f32 0.0, %v813
        %v815 = vpop.f32.mrf.mxu0
        %816 = vdwg.mxu0
        %v818 = vsel %vm579, %v794, 0
        %v821 = vsel %vm800, %v576, 0
        %823 = vmatpush.bf16.msra.mxu0 0
        %824 = vmatpush.bf16.msra.mxu0 0
        %825 = vmatpush.bf16.msra.mxu0 0
        %826 = vmatpush.bf16.msra.mxu0 0
        %827 = vmatpush.bf16.msra.mxu0 0
        %828 = vmatpush.bf16.msra.mxu0 0
        %829 = vmatpush.bf16.msra.mxu0 0
        %830 = vmatpush.bf16.msra.mxu0 %v821
        %831 = vmatmul.bf16.gmra.mxu0 %v818
        %v832 = vpop.f32.mrf.mxu0
        %v833 = vadd.f32 0.0, %v832
        %v834 = vpop.f32.mrf.mxu0
        %835 = vdwg.mxu0
        %v837 = vsel %vm579, %v795, 0
        %v840 = vsel %vm800, %v577, 0
        %842 = vmatpush.bf16.msra.mxu0 0
        %843 = vmatpush.bf16.msra.mxu0 0
        %844 = vmatpush.bf16.msra.mxu0 0
        %845 = vmatpush.bf16.msra.mxu0 0
        %846 = vmatpush.bf16.msra.mxu0 0
        %847 = vmatpush.bf16.msra.mxu0 0
        %848 = vmatpush.bf16.msra.mxu0 0
        %849 = vmatpush.bf16.msra.mxu0 %v840
        %850 = vmatmul.bf16.gmra.mxu0 %v837
        %v851 = vpop.f32.mrf.mxu0
        %v852 = vadd.f32 0.0, %v851
        %v853 = vpop.f32.mrf.mxu0
        %854 = vdwg.mxu0
        %v856 = vsel %vm579, %v796, 0
        %v859 = vsel %vm800, %v578, 0
        %861 = vmatpush.bf16.msra.mxu0 0
        %862 = vmatpush.bf16.msra.mxu0 0
        %863 = vmatpush.bf16.msra.mxu0 0
        %864 = vmatpush.bf16.msra.mxu0 0
        %865 = vmatpush.bf16.msra.mxu0 0
        %866 = vmatpush.bf16.msra.mxu0 0
        %867 = vmatpush.bf16.msra.mxu0 0
        %868 = vmatpush.bf16.msra.mxu0 %v859
        %869 = vmatmul.bf16.gmra.mxu0 %v856
        %v870 = vpop.f32.mrf.mxu0
        %v871 = vadd.f32 0.0, %v870
        %v872 = vpop.f32.mrf.mxu0
        %873 = vdwg.mxu0
        %v874 = vadd.f32 %v789, %v814
        %v875 = vadd.f32 %v790, %v833
        %v876 = vadd.f32 %v791, %v852
        %v877 = vadd.f32 %v792, %v871
        %878 = vst.msk [vmem:[#allocation4] sm:$0xff] %vm579, %v874
        %879 = vst.msk [vmem:[#allocation4 + $0x8] sm:$0xff] %vm579, %v875
        %880 = vst.msk [vmem:[#allocation4 + $0x10] sm:$0xff] %vm579, %v876
        %881 = vst.msk [vmem:[#allocation4 + $0x18] sm:$0xff] %vm579, %v877
        %882 = vst.msk [vmem:[#allocation2] sm:$0xff] %vm760, %v688
        %883 = vst.msk [vmem:[#allocation2 + $0x8] sm:$0xff] %vm760, %v689
        %884 = vst.msk [vmem:[#allocation2 + $0x10] sm:$0xff] %vm760, %v690
        %885 = vst.msk [vmem:[#allocation2 + $0x18] sm:$0xff] %vm760, %v691
      $region76: #{gpt_forward.6} parent=67 // pred_fallthru
        _
      // Predicated region
      $region77: #{gpt_forward.6} parent=67 // pred_check
        %p886 = pneg %p541
      $region78: #{gpt_forward.6} parent=67 // pred_check_branch
        %888 = sbr.rel (%p886) target = $region80
      $region79: #{gpt_forward.6} parent=67 // pred_region
        %v889 = vld [vmem:[#allocation4] sm:$0xff]
        %v890 = vld [vmem:[#allocation4 + $0x8] sm:$0xff]
        %v891 = vld [vmem:[#allocation4 + $0x10] sm:$0xff]
        %v892 = vld [vmem:[#allocation4 + $0x18] sm:$0xff]
        %v893 = vld [vmem:[#allocation3] sm:$0xff]
        %v894 = vld [vmem:[#allocation3 + $0x8] sm:$0xff]
        %v895 = vld [vmem:[#allocation3 + $0x10] sm:$0xff]
        %v896 = vld [vmem:[#allocation3 + $0x18] sm:$0xff]
        %v897 = vrcp.pop %v893
        %v898 = vrcp.pop %v894
        %v899 = vrcp.pop %v895
        %v900 = vrcp.pop %v896
        %902 = vset.pattern.permute.xlu0 0
        %903 = vperm.xlu0 %902, %v897
        %v904 = vpop.permute.xlu0 %903
        %907 = vset.pattern.permute.xlu0 0
        %908 = vperm.xlu0 %907, %v898
        %v909 = vpop.permute.xlu0 %908
        %912 = vset.pattern.permute.xlu0 0
        %913 = vperm.xlu0 %912, %v899
        %v914 = vpop.permute.xlu0 %913
        %917 = vset.pattern.permute.xlu0 0
        %918 = vperm.xlu0 %917, %v900
        %v919 = vpop.permute.xlu0 %918
        %v921 = vmul.f32 %v889, %v904
        %v922 = vmul.f32 %v890, %v909
        %v923 = vmul.f32 %v891, %v914
        %v924 = vmul.f32 %v892, %v919
        %v925 = vpack.c.bf16 %v921, %v921
        %v926 = vpack.c.bf16 %v922, %v922
        %v927 = vpack.c.bf16 %v923, %v923
        %v928 = vpack.c.bf16 %v924, %v924
        %v929 = vld [vmem:[%s4] sm:$0xf]
        %v930 = vld [vmem:[%s4 + $0x4] sm:$0xf]
        %v931 = vld [vmem:[%s4 + $0x8] sm:$0xf]
        %v932 = vld [vmem:[%s4 + $0xc] sm:$0xf]
        %vm933 = vcmask 64512
        %v935 = vsel %vm933, %v925, 0
        %vm937 = vcmask 1043456
        %v939 = vsel %vm937, %v929, 0
        %941 = vmatpush.bf16.msra.mxu0 0
        %942 = vmatpush.bf16.msra.mxu0 0
        %943 = vmatpush.bf16.msra.mxu0 0
        %944 = vmatpush.bf16.msra.mxu0 0
        %945 = vmatpush.bf16.msra.mxu0 0
        %946 = vmatpush.bf16.msra.mxu0 0
        %947 = vmatpush.bf16.msra.mxu0 0
        %948 = vmatpush.bf16.msra.mxu0 %v939
        %949 = vmatmul.bf16.gmra.mxu0 %v935
        %v950 = vpop.f32.mrf.mxu0
        %v951 = vadd.f32 0.0, %v950
        %v952 = vpop.f32.mrf.mxu0
        %953 = vdwg.mxu0
        %v955 = vsel %vm933, %v926, 0
        %v958 = vsel %vm937, %v930, 0
        %960 = vmatpush.bf16.msra.mxu0 0
        %961 = vmatpush.bf16.msra.mxu0 0
        %962 = vmatpush.bf16.msra.mxu0 0
        %963 = vmatpush.bf16.msra.mxu0 0
        %964 = vmatpush.bf16.msra.mxu0 0
        %965 = vmatpush.bf16.msra.mxu0 0
        %966 = vmatpush.bf16.msra.mxu0 0
        %967 = vmatpush.bf16.msra.mxu0 %v958
        %968 = vmatmul.bf16.gmra.mxu0 %v955
        %v969 = vpop.f32.mrf.mxu0
        %v970 = vadd.f32 0.0, %v969
        %v971 = vpop.f32.mrf.mxu0
        %972 = vdwg.mxu0
        %v974 = vsel %vm933, %v927, 0
        %v977 = vsel %vm937, %v931, 0
        %979 = vmatpush.bf16.msra.mxu0 0
        %980 = vmatpush.bf16.msra.mxu0 0
        %981 = vmatpush.bf16.msra.mxu0 0
        %982 = vmatpush.bf16.msra.mxu0 0
        %983 = vmatpush.bf16.msra.mxu0 0
        %984 = vmatpush.bf16.msra.mxu0 0
        %985 = vmatpush.bf16.msra.mxu0 0
        %986 = vmatpush.bf16.msra.mxu0 %v977
        %987 = vmatmul.bf16.gmra.mxu0 %v974
        %v988 = vpop.f32.mrf.mxu0
        %v989 = vadd.f32 0.0, %v988
        %v990 = vpop.f32.mrf.mxu0
        %991 = vdwg.mxu0
        %v993 = vsel %vm933, %v928, 0
        %v996 = vsel %vm937, %v932, 0
        %998 = vmatpush.bf16.msra.mxu0 0
        %999 = vmatpush.bf16.msra.mxu0 0
        %1000 = vmatpush.bf16.msra.mxu0 0
        %1001 = vmatpush.bf16.msra.mxu0 0
        %1002 = vmatpush.bf16.msra.mxu0 0
        %1003 = vmatpush.bf16.msra.mxu0 0
        %1004 = vmatpush.bf16.msra.mxu0 0
        %1005 = vmatpush.bf16.msra.mxu0 %v996
        %1006 = vmatmul.bf16.gmra.mxu0 %v993
        %v1007 = vpop.f32.mrf.mxu0
        %v1008 = vadd.f32 0.0, %v1007
        %v1009 = vpop.f32.mrf.mxu0
        %1010 = vdwg.mxu0
        %vm1011 = vcmask 261120
        %v1012 = vsel %vm1011, %v951, 0.0
        %v1013 = vsel %vm1011, %v970, 0.0
        %v1014 = vadd.f32 %v1012, %v1013
        %v1015 = vsel %vm1011, %v989, 0.0
        %v1016 = vadd.f32 %v1014, %v1015
        %v1017 = vsel %vm1011, %v1008, 0.0
        %v1018 = vadd.f32 %v1016, %v1017
        %v1019 = vld [vmem:[%s5] sm:$0x1]
        %v1021 = vperm.slane %v1019, 0
        %v1023 = vadd.f32 %v1018, %v1021
        %v1024 = vld [vmem:[%s508] sm:$0xff]
        %v1025 = vadd.f32 %v1023, %v1024
        %v1026 = vld [vmem:[%s6] sm:$0x1]
        %v1027 = vld [vmem:[%s7] sm:$0x1]
        %v1028 = vsel %vm1011, %v1025, 0.0
        %1029 = vadd.xlane.f32.xlu0 %v1028
        %v1030 = vpop.xlane.xlu0 %1029
        %v1031 = vrcp.pop 32.0
        %v1032 = vmul.f32 32.0, %v1031
        %v1033 = vsub.f32 1.0, %v1032
        %v1034 = vmul.f32 %v1031, %v1033
        %v1035 = vadd.f32 %v1031, %v1034
        %vm1036 = vweird.f32 %v1031
        %v1037 = vsel %vm1036, %v1031, %v1035
        %v1038 = vmul.f32 %v1030, %v1037
        %v1039 = vsub.f32 %v1025, %v1038
        %v1040 = vmul.f32 %v1039, %v1039
        %v1041 = vsel %vm1011, %v1040, 0.0
        %1042 = vadd.xlane.f32.xlu0 %v1041
        %v1043 = vpop.xlane.xlu0 %1042
        %v1044 = vmul.f32 %v1043, %v1037
        %v1045 = vadd.f32 %v1044, 1e-05
        %v1046 = vrsqrt.pop %v1045
        %v1047 = vmul.f32 %v1046, %v1045
        %v1048 = vmul.f32 %v1047, %v1046
        %v1049 = vmul.f32 0.5, %v1048
        %v1050 = vsub.f32 1.5, %v1049
        %v1051 = vmul.f32 %v1046, %v1050
        %vm1052 = vweird.f32 %v1045
        %vm1053 = vweird.f32 %v1046
        %vm1054 = vmor %vm1052, %vm1053
        %v1055 = vsel %vm1054, %v1046, %v1051
        %v1056 = vmul.f32 %v1039, %v1055
        %v1058 = vperm.slane %v1026, 0
        %v1060 = vmul.f32 %v1056, %v1058
        %v1062 = vperm.slane %v1027, 0
        %v1064 = vadd.f32 %v1060, %v1062
        %v1065 = vpack.c.bf16 %v1064, %v1064
        %v1066 = vld [vmem:[%s8] sm:$0xf]
        %v1067 = vld [vmem:[%s8 + $0x4] sm:$0xf]
        %v1068 = vld [vmem:[%s8 + $0x8] sm:$0xf]
        %v1069 = vld [vmem:[%s8 + $0xc] sm:$0xf]
        %v1070 = vld [vmem:[%s9] sm:$0x1]
        %v1072 = vperm.slane %v1070, 0
        %v1078 = vunpack.c.l.b16 %v1066
        %v1079 = vunpack.c.l.b16 %v1067
        %v1080 = vunpack.c.l.b16 %v1068
        %v1081 = vunpack.c.l.b16 %v1069
        %v1082 = vpack.c.b16 %v1079, %v1078
        %v1083 = vpack.c.b16 %v1081, %v1080
        %v1087 = vsel %vm1011, %v1065, 0
        %1089 = vmatpush.bf16.msra.mxu0 0
        %1090 = vmatpush.bf16.msra.mxu0 0
        %1091 = vmatpush.bf16.msra.mxu0 0
        %1092 = vmatpush.bf16.msra.mxu0 0
        %1093 = vmatpush.bf16.msra.mxu0 0
        %1094 = vmatpush.bf16.msra.mxu0 0
        %1095 = vmatpush.bf16.msra.mxu0 %v1083
        %1096 = vmatpush.bf16.msra.mxu0 %v1082
        %1097 = vmatmul.bf16.gmra.mxu0 %v1087
        %v1098 = vpop.f32.mrf.mxu0
        %v1099 = vadd.f32 %v1072, %v1098
        %v1100 = vpop.f32.mrf.mxu0
        %1101 = vdwg.mxu0
        %v1102 = vmul.f32 %v1099, 0.5
        %v1103 = vmul.f32 %v1099, %v1099
        %v1104 = vmul.f32 %v1099, %v1103
        %v1105 = vmul.f32 %v1104, 0.044715
        %v1106 = vadd.f32 %v1099, %v1105
        %v1107 = vmul.f32 %v1106, 0.7978845
        %v1108 = vtanh.pop %v1107
        %v1109 = vadd.f32 %v1108, 1.0
        %v1110 = vmul.f32 %v1102, %v1109
        %v1111 = vpack.c.bf16 %v1110, %v1110
        %v1112 = vld [vmem:[%s10] sm:$0xf]
        %v1113 = vld [vmem:[%s10 + $0x4] sm:$0xf]
        %v1114 = vld [vmem:[%s10 + $0x8] sm:$0xf]
        %v1115 = vld [vmem:[%s10 + $0xc] sm:$0xf]
        %v1116 = vld [vmem:[%s10 + $0x10] sm:$0xf]
        %v1117 = vld [vmem:[%s10 + $0x14] sm:$0xf]
        %v1118 = vld [vmem:[%s10 + $0x18] sm:$0xf]
        %v1119 = vld [vmem:[%s10 + $0x1c] sm:$0xf]
        %v1120 = vld [vmem:[%s10 + $0x20] sm:$0xf]
        %v1121 = vld [vmem:[%s10 + $0x24] sm:$0xf]
        %v1122 = vld [vmem:[%s10 + $0x28] sm:$0xf]
        %v1123 = vld [vmem:[%s10 + $0x2c] sm:$0xf]
        %v1124 = vld [vmem:[%s10 + $0x30] sm:$0xf]
        %v1125 = vld [vmem:[%s10 + $0x34] sm:$0xf]
        %v1126 = vld [vmem:[%s10 + $0x38] sm:$0xf]
        %v1127 = vld [vmem:[%s10 + $0x3c] sm:$0xf]
        %v1128 = vld [vmem:[%s11] sm:$0x1]
        %v1130 = vperm.slane %v1128, 0
        %v1148 = vunpack.c.l.b16 %v1112
        %v1149 = vunpack.c.l.b16 %v1113
        %v1150 = vunpack.c.l.b16 %v1114
        %v1151 = vunpack.c.l.b16 %v1115
        %v1152 = vunpack.c.l.b16 %v1116
        %v1153 = vunpack.c.l.b16 %v1117
        %v1154 = vunpack.c.l.b16 %v1118
        %v1155 = vunpack.c.l.b16 %v1119
        %v1156 = vunpack.c.l.b16 %v1120
        %v1157 = vunpack.c.l.b16 %v1121
        %v1158 = vunpack.c.l.b16 %v1122
        %v1159 = vunpack.c.l.b16 %v1123
        %v1160 = vunpack.c.l.b16 %v1124
        %v1161 = vunpack.c.l.b16 %v1125
        %v1162 = vunpack.c.l.b16 %v1126
        %v1163 = vunpack.c.l.b16 %v1127
        %v1164 = vpack.c.b16 %v1149, %v1148
        %v1165 = vpack.c.b16 %v1151, %v1150
        %v1166 = vpack.c.b16 %v1153, %v1152
        %v1167 = vpack.c.b16 %v1155, %v1154
        %v1168 = vpack.c.b16 %v1157, %v1156
        %v1169 = vpack.c.b16 %v1159, %v1158
        %v1170 = vpack.c.b16 %v1161, %v1160
        %v1171 = vpack.c.b16 %v1163, %v1162
        %1180 = vmatpush.bf16.msra.mxu0 %v1171
        %1181 = vmatpush.bf16.msra.mxu0 %v1170
        %1182 = vmatpush.bf16.msra.mxu0 %v1169
        %1183 = vmatpush.bf16.msra.mxu0 %v1168
        %1184 = vmatpush.bf16.msra.mxu0 %v1167
        %1185 = vmatpush.bf16.msra.mxu0 %v1166
        %1186 = vmatpush.bf16.msra.mxu0 %v1165
        %1187 = vmatpush.bf16.msra.mxu0 %v1164
        %1188 = vmatmul.bf16.gmra.mxu0 %v1111
        %v1189 = vpop.f32.mrf.mxu0
        %v1190 = vadd.f32 %v1130, %v1189
        %v1191 = vpop.f32.mrf.mxu0
        %1192 = vdwg.mxu0
        %v1193 = vadd.f32 %v1190, %v1025
        %1194 = vst.msk [vmem:[%s539] sm:$0xff] %vm1011, %v1193
      $region80: #{gpt_forward.6} parent=67 // pred_fallthru
        _
      %p1195 = scmp.lt.s32.totalorder %s28, 1
      %s1196 = scalar_select %p1195, %s28, 1
      %p1197 = scmp.lt.s32.totalorder %s29, 0
      %s1198 = scalar_select %p1197, %s29, 0
      %s1199 = sadd.s32 %s1198, %s1196
      %s1200 = smul.addr %s1199, 8
      %s1201 = scalar_lea.vmem %s12, %s1200
      // Predicated region
      $region81: #{gpt_forward.6} parent=67 // pred_check
        %p1202 = pneg %p342
      $region82: #{gpt_forward.6} parent=67 // pred_check_branch
        %1204 = sbr.rel (%p1202) target = $region84
      $region83: #{gpt_forward.6} parent=67 // pred_region
        _
      $region84: #{gpt_forward.6} parent=67 // pred_fallthru
        _
    $region68: #{gpt_forward.6} parent=5 // pred_fallthru
      _
    %p1205 = scmp.le.s32.totalorder 2, %s18
    // Predicated region
    $region85: #{gpt_forward.6} parent=5 // pred_check
      %p1206 = pneg %p1205
    $region86: #{gpt_forward.6} parent=5 // pred_check_branch
      %1208 = sbr.rel (%p1206) target = $region88
    $region87: #{gpt_forward.6} parent=5 // pred_region
      %s1209 = ssub.s32 %s18, 2
      // Predicated region
      $region89: #{gpt_forward.6} parent=87 // pred_check
        %p1210 = pneg %p348
      $region90: #{gpt_forward.6} parent=87 // pred_check_branch
        %1212 = sbr.rel (%p1210) target = $region92
      $region91: #{gpt_forward.6} parent=87 // pred_region
        %p1213 = scmp.lt.s32.totalorder %s31, 1
        %s1214 = scalar_select %p1213, %s31, 1
        %p1215 = scmp.lt.s32.totalorder %s32, 0
        %s1216 = scalar_select %p1215, %s32, 0
        %s1217 = sadd.s32 %s1216, %s1214
        %s1218 = smul.addr %s1217, 8
        %s1219 = scalar_lea.vmem %s12, %s1218
      $region92: #{gpt_forward.6} parent=87 // pred_fallthru
        _
    $region88: #{gpt_forward.6} parent=5 // pred_fallthru
      _
  $region6: #{gpt_forward.6} parent=0 // loop_footer
    %s22 = sadd.s32 1, %s18
  $region7: #{gpt_forward.6} parent=0 // loop_footer_branch
    %17 = sbr.rel target = $region3
  $region8: #{gpt_forward.6} parent=0 // loop_exit
    _

</llo_original>
